<compile_context>
chip_gen: v6e
topology: v6e:2x2x1
jax: 0.10.0
libtpu: 0.0.40
codegen_flags: <defaults>
</compile_context>

<pallas_src>
import functools

import jax
import jax.numpy as jnp
import numpy as np
from jax.experimental import pallas as pl
from jax.experimental.pallas import tpu as pltpu


def _round_up(x, m):
    return (x + m - 1) // m * m


# ----------------------------- Pallas kernel -------------------------------

def cnn_classifier_kernel(tok_ref, emb_ref, w_ref, bm_ref, fcw_ref, fcb_ref,
                          o_ref, *, tb, time_chunk):
    """One batch tile per grid step: in-kernel embedding gather (one-hot matmul),
    conv1d with all filter banks fused on the N axis, bias+mask+ReLU, streamed
    time-max, and the fused FC head."""
    kmax, e_pad, f_pad = w_ref.shape
    v_pad = emb_ref.shape[0]
    lout_pad = bm_ref.shape[1]
    m_tok = tok_ref.shape[1]
    lt = m_tok // tb
    tc = time_chunk
    m = tb * tc

    # ---- fused embedding gather: one-hot (MXU) against the VMEM-resident table
    tok = tok_ref[0]                                         # (TB*Lt, 1) int32
    iota_v = jax.lax.broadcasted_iota(jnp.int32, (m_tok, v_pad), 1)
    onehot = jnp.where(tok == iota_v, 1.0, 0.0).astype(jnp.bfloat16)
    x_flat = jnp.dot(onehot, emb_ref[...],
                     preferred_element_type=jnp.float32).astype(jnp.bfloat16)
    x = x_flat.reshape(tb, lt, e_pad)        # free split: lt is a multiple of 8

    bm = bm_ref[0]                                           # (Lout_pad, F_pad)

    # ---- conv banks (N-fused) + bias/mask + ReLU, streamed max over time -----
    pooled = None
    for c in range(lout_pad // tc):
        t0 = c * tc
        acc = jnp.dot(x[:, t0:t0 + tc, :].reshape(m, e_pad), w_ref[0],
                      preferred_element_type=jnp.float32)
        for j in range(1, kmax):
            acc = acc + jnp.dot(
                x[:, t0 + j:t0 + j + tc, :].reshape(m, e_pad), w_ref[j],
                preferred_element_type=jnp.float32)
        # bias at valid positions, -1e30 at invalid/padded ones -> ReLU zeroes
        # them, so the time-max is exactly the masked max.
        act = jnp.maximum(acc.reshape(tb, tc, f_pad) + bm[t0:t0 + tc, :], 0.0)
        cmax = jnp.max(act, axis=1)                          # (TB, F_pad)
        pooled = cmax if pooled is None else jnp.maximum(pooled, cmax)

    # ---- fused FC head (Dropout is the identity at inference) ---------------
    # TODO(synk): training-mode Dropout(p=0.5) Bernoulli mask not implemented.
    o_ref[0] = (jnp.dot(pooled.astype(jnp.bfloat16), fcw_ref[...],
                        preferred_element_type=jnp.float32) + fcb_ref[...])


# ------------------------------- Wrapper ------------------------------------

def _pick_vmem_limit_bytes():
    try:
        kind = jax.devices()[0].device_kind.lower()
    except Exception:
        kind = ""
    if "v5" in kind or "v6" in kind:
        return 100 * 1024 * 1024          # v5e/v6e: 128 MiB physical VMEM
    return 48 * 1024 * 1024               # v7x (64 MiB) & unknown: conservative


def cnn_classifier_forward(tokens, emb_table, conv_ws, conv_bs, fc_w, fc_b,
                           filter_sizes, *, batch_tile=None, max_time_chunk=256):
    """tokens: (B, L) int32.  Returns logits (B, C) float32."""
    B, L = tokens.shape
    V, E = emb_table.shape
    C = fc_w.shape[0]
    num_filters = tuple(int(w.shape[0]) for w in conv_ws)
    F_total = int(sum(num_filters))
    kmin, kmax = min(filter_sizes), max(filter_sizes)
    Lout = L - kmin + 1                           # shared conv-output length

    # Tile-aligned padded dims (lane x128, sublane x8).
    F_pad = _round_up(F_total, 128)
    C_pad = _round_up(C, 128)
    E_pad = _round_up(E, 128)
    V_pad = _round_up(V, 128)
    TC = min(_round_up(Lout, 8), max_time_chunk)  # sublane-aligned time chunk
    Lout_pad = _round_up(Lout, TC)
    Lt = _round_up(Lout_pad + kmax - 1, 8)        # padded token length

    # Batch tiling: TB multiple of 8; keep nt >= 2 when possible (v7x 2 TCs).
    B8 = _round_up(B, 8)
    if batch_tile is None:
        TB = min(B8, 64)
    else:
        TB = _round_up(min(int(batch_tile), B8), 8)
    TB = min(TB, B8)
    nt = pl.cdiv(B8, TB)
    if nt == 1 and TB >= 16:
        TB //= 2
        nt = pl.cdiv(B8, TB)
    B_pad = nt * TB

    # Token tile, flattened to (nt, TB*Lt, 1) for the in-kernel one-hot gather.
    tok = jnp.asarray(tokens, jnp.int32)
    tok = jnp.pad(tok, ((0, B_pad - B), (0, Lt - L)))       # pad id 0 (masked)
    tok3 = tok.reshape(nt, TB * Lt, 1)

    # Embedding table, zero-padded and bf16, resident in VMEM inside the kernel.
    # TODO(synk): for huge vocab tables (>~8-16 MiB) use a manual DMA row-gather
    # from HBM (memory_space=pl.ANY) instead of the one-hot matmul.
    emb_np = np.zeros((V_pad, E_pad), np.float32)
    emb_np[:V, :E] = np.asarray(emb_table, np.float32)
    emb = jnp.asarray(emb_np, jnp.bfloat16)

    # Pack all conv banks into one (kmax, E_pad, F_pad) weight (taps >= k are 0).
    w_all = np.zeros((kmax, E_pad, F_pad), np.float32)
    col = 0
    for Wg, k in zip(conv_ws, filter_sizes):
        Wg = np.asarray(Wg, np.float32)                     # (Fg, E, k)
        Fg = Wg.shape[0]
        w_all[:k, :E, col:col + Fg] = np.transpose(Wg, (2, 1, 0))
        col += Fg
    w_all = jnp.asarray(w_all, jnp.bfloat16)

    # Merged additive bias + validity mask: bias where valid, -1e30 elsewhere
    # (padded filter columns and out-of-range / padded time rows).
    bm_np = np.full((1, Lout_pad, F_pad), -1e30, np.float32)
    col = 0
    for k, bg in zip(filter_sizes, conv_bs):
        bg = np.asarray(bg, np.float32)
        Fg = bg.shape[0]
        bm_np[0, :L - k + 1, col:col + Fg] = bg[None, :]
        col += Fg
    bm = jnp.asarray(bm_np)

    # FC: pre-transposed, zero-padded (padded filter columns / classes -> 0),
    # bf16 for a single-pass MXU matmul; concat is implicit in column order.
    fcw_np = np.zeros((F_pad, C_pad), np.float32)
    fcw_np[:F_total, :C] = np.asarray(fc_w, np.float32).T
    fcw = jnp.asarray(fcw_np, jnp.bfloat16)
    fcb_np = np.zeros((1, C_pad), np.float32)
    fcb_np[0, :C] = np.asarray(fc_b, np.float32)
    fcb = jnp.asarray(fcb_np)

    kernel = functools.partial(cnn_classifier_kernel, tb=TB, time_chunk=TC)

    flops = 2 * B_pad * (Lt * V_pad * E_pad                 # one-hot gather
                         + Lout_pad * E_pad * F_pad * kmax  # conv banks
                         + F_pad * C_pad)                   # fc head
    bytes_accessed = (tok3.size * 4 + emb.size * 2 + w_all.size * 2
                      + bm.size * 4 + fcw.size * 2 + fcb.size * 4
                      + B_pad * C_pad * 4)
    cost = pl.CostEstimate(flops=flops, transcendentals=0,
                           bytes_accessed=bytes_accessed)

    out = pl.pallas_call(
        kernel,
        out_shape=jax.ShapeDtypeStruct((nt, TB, C_pad), jnp.float32),
        grid=(nt,),
        in_specs=[
            pl.BlockSpec((1, TB * Lt, 1), lambda b: (b, 0, 0)),       # token ids
            pl.BlockSpec((V_pad, E_pad), lambda b: (0, 0)),           # emb table
            pl.BlockSpec((kmax, E_pad, F_pad), lambda b: (0, 0, 0)),  # conv W
            pl.BlockSpec((1, Lout_pad, F_pad), lambda b: (0, 0, 0)),  # bias+mask
            pl.BlockSpec((F_pad, C_pad), lambda b: (0, 0)),           # fc W^T
            pl.BlockSpec((1, C_pad), lambda b: (0, 0)),               # fc b
        ],
        out_specs=pl.BlockSpec((1, TB, C_pad), lambda b: (b, 0, 0)),
        compiler_params=pltpu.CompilerParams(
            dimension_semantics=("parallel",),            # megacore / v7x 2 TCs
            vmem_limit_bytes=_pick_vmem_limit_bytes()),
        cost_estimate=cost,
    )(tok3, emb, w_all, bm, fcw, fcb)

    return out.reshape(B_pad, C_pad)[:B, :C]


# ------------------------------ Reference -----------------------------------

def reference_forward(tokens, emb_table, conv_ws, conv_bs, fc_w, fc_b,
                      filter_sizes):
    """Pure-JAX f32 reference matching the PyTorch forward (inference mode)."""
    x = jnp.take(emb_table, tokens, axis=0).astype(jnp.float32)  # (B, L, E)
    L = x.shape[1]
    feats = []
    for W, b, k in zip(conv_ws, conv_bs, filter_sizes):
        Lout = L - k + 1
        conv = sum(jnp.einsum('ble,fe->blf', x[:, j:j + Lout, :], W[:, :, j])
                   for j in range(k))
        act = jnp.maximum(conv + b[None, None, :], 0.0)
        feats.append(jnp.max(act, axis=1))
    feat = jnp.concatenate(feats, axis=1)
    return feat @ fc_w.T + fc_b[None, :]


# --------------------------------- Main --------------------------------------

if __name__ == "__main__":
    # Small, forward-consistent shapes; batch tiled into 2 grid steps (TB=8).
    B, L = 16, 16                # batch, max sentence length
    vocab, E = 32, 32            # vocab size, embed_dim
    filter_sizes = (3, 4, 5)
    num_filters = (8, 8, 8)
    C = 4                        # out_units (n_classes)

    key = jax.random.PRNGKey(0)
    keys = jax.random.split(key, 10)

    tokens = jax.random.randint(keys[0], (B, L), 0, vocab, dtype=jnp.int32)
    emb_table = jax.random.normal(keys[1], (vocab, E), jnp.float32) * 0.1

    conv_ws = [jax.random.normal(keys[2 + i],
                                 (num_filters[i], E, filter_sizes[i]),
                                 jnp.float32) * 0.1
               for i in range(len(filter_sizes))]
    conv_bs = [jax.random.normal(keys[5 + i], (num_filters[i],),
                                 jnp.float32) * 0.1
               for i in range(len(filter_sizes))]
    fc_w = jax.random.normal(keys[8], (C, int(np.sum(num_filters))),
                             jnp.float32) * 0.1
    fc_b = jax.random.normal(keys[9], (C,), jnp.float32) * 0.1

    logits = cnn_classifier_forward(tokens, emb_table, conv_ws, conv_bs,
                                    fc_w, fc_b, filter_sizes, batch_tile=8)
    logits = jax.block_until_ready(logits)

    ref = reference_forward(tokens, emb_table, conv_ws, conv_bs,
                            fc_w, fc_b, filter_sizes)
    # bf16 embeddings / conv / fc weights in the kernel (f32 accumulation).
    np.testing.assert_allclose(np.asarray(logits), np.asarray(ref),
                               rtol=2e-2, atol=2e-2)

    print("KERNEL_OK")
</pallas_src>

<mosaic_0001>
module attributes {stable_mosaic.version = 11 : i64} {
  func.func @cnn_classifier_kernel(%arg0: i32, %arg1: memref<1x192x1xi32, #tpu.memory_space<vmem>>, %arg2: memref<128x128xbf16, #tpu.memory_space<vmem>>, %arg3: memref<5x128x128xbf16, #tpu.memory_space<vmem>>, %arg4: memref<1x16x128xf32, #tpu.memory_space<vmem>>, %arg5: memref<128x128xbf16, #tpu.memory_space<vmem>>, %arg6: memref<1x128xf32, #tpu.memory_space<vmem>>, %arg7: memref<1x8x128xf32, #tpu.memory_space<vmem>>) attributes {dimension_semantics = [#tpu.dimension_semantics<parallel>], iteration_bounds = array<i64: 2>, scalar_prefetch = 0 : i64, scratch_operands = 0 : i64, tpu.core_type = #tpu.core_type<tc>, window_params = [{transform_indices = @transform_0, window_bounds = array<i64: 1, 192, 1>}, {pipeline_mode = #tpu.pipeline_mode<synchronous>, transform_indices = @transform_1, window_bounds = array<i64: 128, 128>}, {pipeline_mode = #tpu.pipeline_mode<synchronous>, transform_indices = @transform_2, window_bounds = array<i64: 5, 128, 128>}, {pipeline_mode = #tpu.pipeline_mode<synchronous>, transform_indices = @transform_3, window_bounds = array<i64: 1, 16, 128>}, {pipeline_mode = #tpu.pipeline_mode<synchronous>, transform_indices = @transform_4, window_bounds = array<i64: 128, 128>}, {pipeline_mode = #tpu.pipeline_mode<synchronous>, transform_indices = @transform_5, window_bounds = array<i64: 1, 128>}, {transform_indices = @transform_6, window_bounds = array<i64: 1, 8, 128>}]} {
    %c0 = arith.constant 0 : index
    %c0_0 = arith.constant 0 : index
    %c0_1 = arith.constant 0 : index
    %0 = vector.load %arg1[%c0, %c0_0, %c0_1] : memref<1x192x1xi32, #tpu.memory_space<vmem>>, vector<1x192x1xi32>
    %1 = vector.shape_cast %0 : vector<1x192x1xi32> to vector<192x1xi32>
    %2 = tpu.iota {dimensions = array<i32: 1>} : vector<192x128xi32>
    %3 = vector.broadcast %1 : vector<192x1xi32> to vector<192x128xi32>
    %4 = arith.cmpi eq, %3, %2 : vector<192x128xi32>
    %cst = arith.constant 1.000000e+00 : f32
    %cst_2 = arith.constant 0.000000e+00 : f32
    %5 = vector.broadcast %cst : f32 to vector<192x128xf32>
    %6 = vector.broadcast %cst_2 : f32 to vector<192x128xf32>
    %7 = arith.select %4, %5, %6 : vector<192x128xi1>, vector<192x128xf32>
    %8 = arith.truncf %7 : vector<192x128xf32> to vector<192x128xbf16>
    %c0_3 = arith.constant 0 : index
    %c0_4 = arith.constant 0 : index
    %9 = vector.load %arg2[%c0_3, %c0_4] : memref<128x128xbf16, #tpu.memory_space<vmem>>, vector<128x128xbf16>
    %cst_5 = arith.constant dense<0.000000e+00> : vector<192x128xf32>
    %10 = tpu.matmul %8, %9, %cst_5 {dimension_numbers = #tpu.dot_dimension_numbers<[1], [0], [0], [1], [0, 0, 1, 1], [], []>} : vector<192x128xbf16>, vector<128x128xbf16>, vector<192x128xf32> -> vector<192x128xf32>
    %11 = arith.truncf %10 : vector<192x128xf32> to vector<192x128xbf16>
    %12 = vector.shape_cast %11 : vector<192x128xbf16> to vector<8x24x128xbf16>
    %c0_6 = arith.constant 0 : index
    %c0_7 = arith.constant 0 : index
    %c0_8 = arith.constant 0 : index
    %13 = vector.load %arg4[%c0_6, %c0_7, %c0_8] : memref<1x16x128xf32, #tpu.memory_space<vmem>>, vector<1x16x128xf32>
    %14 = vector.shape_cast %13 : vector<1x16x128xf32> to vector<16x128xf32>
    %15 = vector.extract_strided_slice %12 {offsets = [0, 0, 0], sizes = [8, 16, 128], strides = [1, 1, 1]} : vector<8x24x128xbf16> to vector<8x16x128xbf16>
    %16 = vector.shape_cast %15 : vector<8x16x128xbf16> to vector<128x128xbf16>
    %c0_9 = arith.constant 0 : index
    %c0_10 = arith.constant 0 : index
    %c0_11 = arith.constant 0 : index
    %17 = vector.load %arg3[%c0_9, %c0_10, %c0_11] : memref<5x128x128xbf16, #tpu.memory_space<vmem>>, vector<1x128x128xbf16>
    %18 = vector.shape_cast %17 : vector<1x128x128xbf16> to vector<128x128xbf16>
    %cst_12 = arith.constant dense<0.000000e+00> : vector<128x128xf32>
    %19 = tpu.matmul %16, %18, %cst_12 {dimension_numbers = #tpu.dot_dimension_numbers<[1], [0], [0], [1], [0, 0, 1, 1], [], []>} : vector<128x128xbf16>, vector<128x128xbf16>, vector<128x128xf32> -> vector<128x128xf32>
    %20 = vector.extract_strided_slice %12 {offsets = [0, 1, 0], sizes = [8, 16, 128], strides = [1, 1, 1]} : vector<8x24x128xbf16> to vector<8x16x128xbf16>
    %21 = vector.shape_cast %20 : vector<8x16x128xbf16> to vector<128x128xbf16>
    %c1 = arith.constant 1 : index
    %c0_13 = arith.constant 0 : index
    %c0_14 = arith.constant 0 : index
    %22 = vector.load %arg3[%c1, %c0_13, %c0_14] : memref<5x128x128xbf16, #tpu.memory_space<vmem>>, vector<1x128x128xbf16>
    %23 = vector.shape_cast %22 : vector<1x128x128xbf16> to vector<128x128xbf16>
    %cst_15 = arith.constant dense<0.000000e+00> : vector<128x128xf32>
    %24 = tpu.matmul %21, %23, %cst_15 {dimension_numbers = #tpu.dot_dimension_numbers<[1], [0], [0], [1], [0, 0, 1, 1], [], []>} : vector<128x128xbf16>, vector<128x128xbf16>, vector<128x128xf32> -> vector<128x128xf32>
    %25 = arith.addf %19, %24 : vector<128x128xf32>
    %26 = vector.extract_strided_slice %12 {offsets = [0, 2, 0], sizes = [8, 16, 128], strides = [1, 1, 1]} : vector<8x24x128xbf16> to vector<8x16x128xbf16>
    %27 = vector.shape_cast %26 : vector<8x16x128xbf16> to vector<128x128xbf16>
    %c2 = arith.constant 2 : index
    %c0_16 = arith.constant 0 : index
    %c0_17 = arith.constant 0 : index
    %28 = vector.load %arg3[%c2, %c0_16, %c0_17] : memref<5x128x128xbf16, #tpu.memory_space<vmem>>, vector<1x128x128xbf16>
    %29 = vector.shape_cast %28 : vector<1x128x128xbf16> to vector<128x128xbf16>
    %cst_18 = arith.constant dense<0.000000e+00> : vector<128x128xf32>
    %30 = tpu.matmul %27, %29, %cst_18 {dimension_numbers = #tpu.dot_dimension_numbers<[1], [0], [0], [1], [0, 0, 1, 1], [], []>} : vector<128x128xbf16>, vector<128x128xbf16>, vector<128x128xf32> -> vector<128x128xf32>
    %31 = arith.addf %25, %30 : vector<128x128xf32>
    %32 = vector.extract_strided_slice %12 {offsets = [0, 3, 0], sizes = [8, 16, 128], strides = [1, 1, 1]} : vector<8x24x128xbf16> to vector<8x16x128xbf16>
    %33 = vector.shape_cast %32 : vector<8x16x128xbf16> to vector<128x128xbf16>
    %c3 = arith.constant 3 : index
    %c0_19 = arith.constant 0 : index
    %c0_20 = arith.constant 0 : index
    %34 = vector.load %arg3[%c3, %c0_19, %c0_20] : memref<5x128x128xbf16, #tpu.memory_space<vmem>>, vector<1x128x128xbf16>
    %35 = vector.shape_cast %34 : vector<1x128x128xbf16> to vector<128x128xbf16>
    %cst_21 = arith.constant dense<0.000000e+00> : vector<128x128xf32>
    %36 = tpu.matmul %33, %35, %cst_21 {dimension_numbers = #tpu.dot_dimension_numbers<[1], [0], [0], [1], [0, 0, 1, 1], [], []>} : vector<128x128xbf16>, vector<128x128xbf16>, vector<128x128xf32> -> vector<128x128xf32>
    %37 = arith.addf %31, %36 : vector<128x128xf32>
    %38 = vector.extract_strided_slice %12 {offsets = [0, 4, 0], sizes = [8, 16, 128], strides = [1, 1, 1]} : vector<8x24x128xbf16> to vector<8x16x128xbf16>
    %39 = vector.shape_cast %38 : vector<8x16x128xbf16> to vector<128x128xbf16>
    %c4 = arith.constant 4 : index
    %c0_22 = arith.constant 0 : index
    %c0_23 = arith.constant 0 : index
    %40 = vector.load %arg3[%c4, %c0_22, %c0_23] : memref<5x128x128xbf16, #tpu.memory_space<vmem>>, vector<1x128x128xbf16>
    %41 = vector.shape_cast %40 : vector<1x128x128xbf16> to vector<128x128xbf16>
    %cst_24 = arith.constant dense<0.000000e+00> : vector<128x128xf32>
    %42 = tpu.matmul %39, %41, %cst_24 {dimension_numbers = #tpu.dot_dimension_numbers<[1], [0], [0], [1], [0, 0, 1, 1], [], []>} : vector<128x128xbf16>, vector<128x128xbf16>, vector<128x128xf32> -> vector<128x128xf32>
    %43 = arith.addf %37, %42 : vector<128x128xf32>
    %44 = vector.shape_cast %43 : vector<128x128xf32> to vector<8x16x128xf32>
    %45 = vector.shape_cast %14 : vector<16x128xf32> to vector<1x16x128xf32>
    %46 = vector.broadcast %45 : vector<1x16x128xf32> to vector<8x16x128xf32>
    %47 = arith.addf %44, %46 : vector<8x16x128xf32>
    %cst_25 = arith.constant 0.000000e+00 : f32
    %48 = vector.broadcast %cst_25 : f32 to vector<8x16x128xf32>
    %49 = arith.maximumf %47, %48 : vector<8x16x128xf32>
    %cst_26 = arith.constant dense<0xFF800000> : vector<8x128xf32>
    %50 = vector.multi_reduction <maximumf>, %49, %cst_26 [1] : vector<8x16x128xf32> to vector<8x128xf32>
    %51 = arith.truncf %50 : vector<8x128xf32> to vector<8x128xbf16>
    %c0_27 = arith.constant 0 : index
    %c0_28 = arith.constant 0 : index
    %52 = vector.load %arg5[%c0_27, %c0_28] : memref<128x128xbf16, #tpu.memory_space<vmem>>, vector<128x128xbf16>
    %cst_29 = arith.constant dense<0.000000e+00> : vector<8x128xf32>
    %53 = tpu.matmul %51, %52, %cst_29 {dimension_numbers = #tpu.dot_dimension_numbers<[1], [0], [0], [1], [0, 0, 1, 1], [], []>} : vector<8x128xbf16>, vector<128x128xbf16>, vector<8x128xf32> -> vector<8x128xf32>
    %c0_30 = arith.constant 0 : index
    %c0_31 = arith.constant 0 : index
    %54 = vector.load %arg6[%c0_30, %c0_31] : memref<1x128xf32, #tpu.memory_space<vmem>>, vector<1x128xf32>
    %55 = vector.broadcast %54 : vector<1x128xf32> to vector<8x128xf32>
    %56 = arith.addf %53, %55 : vector<8x128xf32>
    %c0_32 = arith.constant 0 : index
    %c0_33 = arith.constant 0 : index
    %c0_34 = arith.constant 0 : index
    %57 = vector.load %arg7[%c0_32, %c0_33, %c0_34] : memref<1x8x128xf32, #tpu.memory_space<vmem>>, vector<1x8x128xf32>
    %58 = vector.shape_cast %57 : vector<1x8x128xf32> to vector<8x128xf32>
    %59 = vector.shape_cast %56 : vector<8x128xf32> to vector<1x8x128xf32>
    tpu.vector_store %arg7[%c0_32, %c0_33, %c0_34], %59 {strides = array<i32>} : memref<1x8x128xf32, #tpu.memory_space<vmem>>, vector<1x8x128xf32>,
    return
  }
  func.func @transform_0(%arg0: i32) -> (i32, i32, i32) {
    %c0_i32 = arith.constant 0 : i32
    %c0_i32_0 = arith.constant 0 : i32
    %c0_i32_1 = arith.constant 0 : i32
    return %arg0, %c0_i32, %c0_i32_0 : i32, i32, i32
  }
  func.func @transform_1(%arg0: i32) -> (i32, i32) {
    %c0_i32 = arith.constant 0 : i32
    %c0_i32_0 = arith.constant 0 : i32
    %c0_i32_1 = arith.constant 0 : i32
    return %c0_i32, %c0_i32_0 : i32, i32
  }
  func.func @transform_2(%arg0: i32) -> (i32, i32, i32) {
    %c0_i32 = arith.constant 0 : i32
    %c0_i32_0 = arith.constant 0 : i32
    %c0_i32_1 = arith.constant 0 : i32
    %c0_i32_2 = arith.constant 0 : i32
    return %c0_i32, %c0_i32_0, %c0_i32_1 : i32, i32, i32
  }
  func.func @transform_3(%arg0: i32) -> (i32, i32, i32) {
    %c0_i32 = arith.constant 0 : i32
    %c0_i32_0 = arith.constant 0 : i32
    %c0_i32_1 = arith.constant 0 : i32
    %c0_i32_2 = arith.constant 0 : i32
    return %c0_i32, %c0_i32_0, %c0_i32_1 : i32, i32, i32
  }
  func.func @transform_4(%arg0: i32) -> (i32, i32) {
    %c0_i32 = arith.constant 0 : i32
    %c0_i32_0 = arith.constant 0 : i32
    %c0_i32_1 = arith.constant 0 : i32
    return %c0_i32, %c0_i32_0 : i32, i32
  }
  func.func @transform_5(%arg0: i32) -> (i32, i32) {
    %c0_i32 = arith.constant 0 : i32
    %c0_i32_0 = arith.constant 0 : i32
    %c0_i32_1 = arith.constant 0 : i32
    return %c0_i32, %c0_i32_0 : i32, i32
  }
  func.func @transform_6(%arg0: i32) -> (i32, i32, i32) {
    %c0_i32 = arith.constant 0 : i32
    %c0_i32_0 = arith.constant 0 : i32
    %c0_i32_1 = arith.constant 0 : i32
    return %arg0, %c0_i32, %c0_i32_0 : i32, i32, i32
  }
}

</mosaic_0001>

<llo_original>
// kernel: tpu_custom_call.1
$region0: #{tpu_custom_call.1}
  #allocation0 [shape = 'u32[]', space=smem, size = 0x4, offset = 0x4, fixed_abs, tag = 'smem constant byte address 0x4 - core index']
  #allocation1 [shape = 'u32[144,128]{1,0:T(1,128)}', space=vmem, size = 0x12000, scoped, tag = 'internal scratch']
  %s0 = inlined_call_operand.vmem [shape: s32[2,192,1], index: 0, kind: input, shape index: {}]
  %s1 = inlined_call_operand.vmem [shape: bf16[128,128], index: 1, kind: input, shape index: {}]
  %s2 = inlined_call_operand.vmem [shape: bf16[5,128,128], index: 2, kind: input, shape index: {}]
  %s3 = inlined_call_operand.hbm [shape: f32[1,16,128], index: 3, kind: input, shape index: {}]
  %s4 = inlined_call_operand.hbm [shape: bf16[128,128], index: 4, kind: input, shape index: {}]
  %s5 = inlined_call_operand.vmem [shape: f32[1,128], index: 5, kind: input, shape index: {}]
  %s6 = inlined_call_operand.hbm [shape: f32[2,8,128], index: 6, kind: output, shape index: {}]
  %s7 = sld [smem:[#allocation0]]
  $region65: #{tpu_custom_call.1} parent=0
    _
  %s9 = ssub.s32 1, %s7
  %s10 = scalar_select 0, %s9, %s7
  $region1: #{tpu_custom_call.1} parent=0
    #allocation2 [shape = 'u8[8192]{0}', space=vmem, size = 0x2000, scoped, tag = 'input window, operand 3, single buffered']
    #allocation3 [shape = 's32[2]{0}', space=sflag, size = 0x8, scoped, tag = 'scoped memory for tpu_custom_call.1']
    #allocation4 [shape = 's32[2]{0}', space=sflag, size = 0x8, scoped, tag = 'scoped memory for tpu_custom_call.1']
    #allocation5 [shape = 'u8[32768]{0}', space=vmem, size = 0x8000, scoped, tag = 'input window, operand 4, single buffered']
    #allocation6 [shape = 's32[1]{0}', space=sflag, size = 0x4, scoped, tag = 'scoped memory for tpu_custom_call.1']
    #allocation7 [shape = 'u8[8192]{0}', space=vmem, size = 0x2000, scoped, tag = 'output window, operand 0']
    %11 = vsyncpa [#allocation3], 0
    %12 = vsyncpa [#allocation6], 0
    %13 = vsyncpa [#allocation4], 0
    %s14 = scalar_lea.sflag [#allocation4], 1
    %15 = vsyncpa %s14, 0
    loop: start=0, step=1, limit=4
    $region2: #{tpu_custom_call.1} parent=1 // loop_pre_header
      _
    $region3: #{tpu_custom_call.1} parent=1 // loop_header
      %s17 = sphi 0, %s21
      %p18 = scmp.ge.s32.totalorder %s17, 4
      %s27 = sphi 0, %s29
      %s30 = sphi 0, %s27
      %s31 = sphi 0, %s30
      %s47 = sphi 0, %s31
      %s51 = sphi 0, %s51
      %s53 = sphi 0, %s51
      %s54 = sphi 0, %s53
      %s68 = sphi 0, %s54
      %s72 = sphi 0, %s72
      %s74 = sphi 0, %s72
      %s75 = sphi 0, %s74
      %s89 = sphi 0, %s75
      %s93 = sphi 0, %s93
      %s95 = sphi 0, %s93
      %s96 = sphi 0, %s95
      %s110 = sphi 0, %s96
      %s114 = sphi 0, %s114
      %s116 = sphi 0, %s114
      %s117 = sphi 0, %s116
      %s131 = sphi 0, %s117
      %s135 = sphi 0, %s135
      %s137 = sphi 0, %s135
      %s138 = sphi 0, %s137
      %s152 = sphi 0, %s138
      %s158 = sphi 0, %s160
      %s161 = sphi 0, %s158
      %s162 = sphi 0, %s161
      %s178 = sphi 0, %s162
    $region4: #{tpu_custom_call.1} parent=1 // loop_header_branch
      %20 = sbr.rel (%p18) target = $region8
    $region5: #{tpu_custom_call.1} parent=1 // loop_body
      %s22 = ssub.s32 %s17, 1
      %s23 = ssub.s32 %s17, 2
      %s24 = sadd.s32 %s17, 1
      %s25 = ssub.s32 %s17, %s24
      %p26 = scmp.eq.s32.totalorder %s25, 0
      %s28 = sadd.s32 %s27, 1
      %s29 = scalar_select %p26, %s27, %s28
      %p32 = pneg %p26
      %p33 = scmp.eq.s32.totalorder %s17, 1
      %p34 = por %p32, %p33
      %p35 = scmp.ne.s32.totalorder %s27, %s30
      %p36 = scmp.eq.s32.totalorder %s17, 0
      %p37 = por %p35, %p36
      %p38 = scmp.ne.s32.totalorder %s27, %s30
      %p39 = scmp.eq.s32.totalorder %s22, 1
      %p40 = por %p38, %p39
      %p41 = scmp.ne.s32.totalorder %s30, %s31
      %p42 = scmp.eq.s32.totalorder %s22, 0
      %p43 = por %p41, %p42
      %p44 = scmp.ne.s32.totalorder %s30, %s31
      %p45 = scmp.eq.s32.totalorder %s23, 1
      %p46 = por %p44, %p45
      %p48 = scmp.ne.s32.totalorder %s31, %s47
      %p49 = scmp.eq.s32.totalorder %s23, 0
      %p50 = por %p48, %p49
      %s52 = sadd.s32 %s51, 1
      %p55 = scmp.eq.s32.totalorder %s17, 1
      %p56 = scmp.ne.s32.totalorder %s51, %s53
      %p57 = scmp.eq.s32.totalorder %s17, 0
      %p58 = por %p56, %p57
      %p59 = scmp.ne.s32.totalorder %s51, %s53
      %p60 = scmp.eq.s32.totalorder %s22, 1
      %p61 = por %p59, %p60
      %p62 = scmp.ne.s32.totalorder %s53, %s54
      %p63 = scmp.eq.s32.totalorder %s22, 0
      %p64 = por %p62, %p63
      %p65 = scmp.ne.s32.totalorder %s53, %s54
      %p66 = scmp.eq.s32.totalorder %s23, 1
      %p67 = por %p65, %p66
      %p69 = scmp.ne.s32.totalorder %s54, %s68
      %p70 = scmp.eq.s32.totalorder %s23, 0
      %p71 = por %p69, %p70
      %s73 = sadd.s32 %s72, 1
      %p76 = scmp.eq.s32.totalorder %s17, 1
      %p77 = scmp.ne.s32.totalorder %s72, %s74
      %p78 = scmp.eq.s32.totalorder %s17, 0
      %p79 = por %p77, %p78
      %p80 = scmp.ne.s32.totalorder %s72, %s74
      %p81 = scmp.eq.s32.totalorder %s22, 1
      %p82 = por %p80, %p81
      %p83 = scmp.ne.s32.totalorder %s74, %s75
      %p84 = scmp.eq.s32.totalorder %s22, 0
      %p85 = por %p83, %p84
      %p86 = scmp.ne.s32.totalorder %s74, %s75
      %p87 = scmp.eq.s32.totalorder %s23, 1
      %p88 = por %p86, %p87
      %p90 = scmp.ne.s32.totalorder %s75, %s89
      %p91 = scmp.eq.s32.totalorder %s23, 0
      %p92 = por %p90, %p91
      %s94 = sadd.s32 %s93, 1
      %p97 = scmp.eq.s32.totalorder %s17, 1
      %p98 = scmp.ne.s32.totalorder %s93, %s95
      %p99 = scmp.eq.s32.totalorder %s17, 0
      %p100 = por %p98, %p99
      %p101 = scmp.ne.s32.totalorder %s93, %s95
      %p102 = scmp.eq.s32.totalorder %s22, 1
      %p103 = por %p101, %p102
      %p104 = scmp.ne.s32.totalorder %s95, %s96
      %p105 = scmp.eq.s32.totalorder %s22, 0
      %p106 = por %p104, %p105
      %p107 = scmp.ne.s32.totalorder %s95, %s96
      %p108 = scmp.eq.s32.totalorder %s23, 1
      %p109 = por %p107, %p108
      %p111 = scmp.ne.s32.totalorder %s96, %s110
      %p112 = scmp.eq.s32.totalorder %s23, 0
      %p113 = por %p111, %p112
      %s115 = sadd.s32 %s114, 1
      %p118 = scmp.eq.s32.totalorder %s17, 1
      %p119 = scmp.ne.s32.totalorder %s114, %s116
      %p120 = scmp.eq.s32.totalorder %s17, 0
      %p121 = por %p119, %p120
      %p122 = scmp.ne.s32.totalorder %s114, %s116
      %p123 = scmp.eq.s32.totalorder %s22, 1
      %p124 = por %p122, %p123
      %p125 = scmp.ne.s32.totalorder %s116, %s117
      %p126 = scmp.eq.s32.totalorder %s22, 0
      %p127 = por %p125, %p126
      %p128 = scmp.ne.s32.totalorder %s116, %s117
      %p129 = scmp.eq.s32.totalorder %s23, 1
      %p130 = por %p128, %p129
      %p132 = scmp.ne.s32.totalorder %s117, %s131
      %p133 = scmp.eq.s32.totalorder %s23, 0
      %p134 = por %p132, %p133
      %s136 = sadd.s32 %s135, 1
      %p139 = scmp.eq.s32.totalorder %s17, 1
      %p140 = scmp.ne.s32.totalorder %s135, %s137
      %p141 = scmp.eq.s32.totalorder %s17, 0
      %p142 = por %p140, %p141
      %p143 = scmp.ne.s32.totalorder %s135, %s137
      %p144 = scmp.eq.s32.totalorder %s22, 1
      %p145 = por %p143, %p144
      %p146 = scmp.ne.s32.totalorder %s137, %s138
      %p147 = scmp.eq.s32.totalorder %s22, 0
      %p148 = por %p146, %p147
      %p149 = scmp.ne.s32.totalorder %s137, %s138
      %p150 = scmp.eq.s32.totalorder %s23, 1
      %p151 = por %p149, %p150
      %p153 = scmp.ne.s32.totalorder %s138, %s152
      %p154 = scmp.eq.s32.totalorder %s23, 0
      %p155 = por %p153, %p154
      %s156 = ssub.s32 %s17, %s24
      %p157 = scmp.eq.s32.totalorder %s156, 0
      %s159 = sadd.s32 %s158, 1
      %s160 = scalar_select %p157, %s158, %s159
      %p163 = pneg %p157
      %p164 = scmp.eq.s32.totalorder %s17, 1
      %p165 = por %p163, %p164
      %p166 = scmp.ne.s32.totalorder %s158, %s161
      %p167 = scmp.eq.s32.totalorder %s17, 0
      %p168 = por %p166, %p167
      %p169 = scmp.ne.s32.totalorder %s158, %s161
      %p170 = scmp.eq.s32.totalorder %s22, 1
      %p171 = por %p169, %p170
      %p172 = scmp.ne.s32.totalorder %s161, %s162
      %p173 = scmp.eq.s32.totalorder %s22, 0
      %p174 = por %p172, %p173
      %p175 = scmp.ne.s32.totalorder %s161, %s162
      %p176 = scmp.eq.s32.totalorder %s23, 1
      %p177 = por %p175, %p176
      %p179 = scmp.ne.s32.totalorder %s162, %s178
      %p180 = scmp.eq.s32.totalorder %s23, 0
      %p181 = por %p179, %p180
      %p182 = scmp.le.s32.totalorder 1, %s17
      %p183 = scmp.lt.s32.totalorder %s17, 3
      %p184 = pnand %p182, %p183
      %p185 = pneg %p184
      // Predicated region
      $region9: #{tpu_custom_call.1} parent=5 // pred_check
        _
      $region10: #{tpu_custom_call.1} parent=5 // pred_check_branch
        %187 = sbr.rel (%p184) target = $region12
      $region11: #{tpu_custom_call.1} parent=5 // pred_region
        %s188 = ssub.s32 %s17, 1
        // Predicated region
        $region13: #{tpu_custom_call.1} parent=11 // pred_check
          %p189 = pneg %p64
        $region14: #{tpu_custom_call.1} parent=11 // pred_check_branch
          %191 = sbr.rel (%p189) target = $region16
        $region15: #{tpu_custom_call.1} parent=11 // pred_region
          _
        $region16: #{tpu_custom_call.1} parent=11 // pred_fallthru
          _
        // Predicated region
        $region17: #{tpu_custom_call.1} parent=11 // pred_check
          %p192 = pneg %p85
        $region18: #{tpu_custom_call.1} parent=11 // pred_check_branch
          %194 = sbr.rel (%p192) target = $region20
        $region19: #{tpu_custom_call.1} parent=11 // pred_region
          _
        $region20: #{tpu_custom_call.1} parent=11 // pred_fallthru
          _
        // Predicated region
        $region21: #{tpu_custom_call.1} parent=11 // pred_check
          %p195 = pneg %p106
        $region22: #{tpu_custom_call.1} parent=11 // pred_check_branch
          %197 = sbr.rel (%p195) target = $region24
        $region23: #{tpu_custom_call.1} parent=11 // pred_region
          %s199 = ssub.s32 256, 256
          %200 = vsyncadd [#allocation3], %s199
          %s201 = sshll.u32 [#allocation2], 4
          %s202 = int_to_ptr.vmem [resolvable:$true] %s201
          %207 = dma.hbm_to_vmem [thread:$0]  %s3, 256, %s202, [#allocation3], 128, 128, 8
        $region24: #{tpu_custom_call.1} parent=11 // pred_fallthru
          _
        // Predicated region
        $region25: #{tpu_custom_call.1} parent=11 // pred_check
          %p208 = pneg %p127
        $region26: #{tpu_custom_call.1} parent=11 // pred_check_branch
          %210 = sbr.rel (%p208) target = $region28
        $region27: #{tpu_custom_call.1} parent=11 // pred_region
          %s212 = ssub.s32 1024, 1024
          %213 = vsyncadd [#allocation6], %s212
          %s214 = sshll.u32 [#allocation5], 4
          %s215 = int_to_ptr.vmem [resolvable:$true] %s214
          %220 = dma.hbm_to_vmem [thread:$0]  %s4, 1024, %s215, [#allocation6], 64, 64, 4
        $region28: #{tpu_custom_call.1} parent=11 // pred_fallthru
          _
        // Predicated region
        $region29: #{tpu_custom_call.1} parent=11 // pred_check
          %p221 = pneg %p148
        $region30: #{tpu_custom_call.1} parent=11 // pred_check_branch
          %223 = sbr.rel (%p221) target = $region32
        $region31: #{tpu_custom_call.1} parent=11 // pred_region
          _
        $region32: #{tpu_custom_call.1} parent=11 // pred_fallthru
          _
      $region12: #{tpu_custom_call.1} parent=5 // pred_fallthru
        _
      %p224 = scmp.lt.s32.totalorder %s17, 2
      // Predicated region
      $region33: #{tpu_custom_call.1} parent=5 // pred_check
        %p225 = pneg %p224
      $region34: #{tpu_custom_call.1} parent=5 // pred_check_branch
        %227 = sbr.rel (%p225) target = $region36
      $region35: #{tpu_custom_call.1} parent=5 // pred_region
        // Predicated region
        $region37: #{tpu_custom_call.1} parent=35 // pred_check
          %p228 = pneg %p37
        $region38: #{tpu_custom_call.1} parent=35 // pred_check_branch
          %230 = sbr.rel (%p228) target = $region40
        $region39: #{tpu_custom_call.1} parent=35 // pred_region
          %p231 = scmp.lt.s32.totalorder %s17, 1
          %s232 = scalar_select %p231, %s17, 1
          %s233 = smul.addr %s232, 24
          %s234 = smul.addr %s233, 8
          %s235 = scalar_lea.vmem %s0, %s234
        $region40: #{tpu_custom_call.1} parent=35 // pred_fallthru
          _
      $region36: #{tpu_custom_call.1} parent=5 // pred_fallthru
        _
      %p236 = scmp.le.s32.totalorder 1, %s17
      %p237 = scmp.lt.s32.totalorder %s17, 3
      %p238 = pnand %p236, %p237
      %p239 = pneg %p238
      // Predicated region
      $region41: #{tpu_custom_call.1} parent=5 // pred_check
        _
      $region42: #{tpu_custom_call.1} parent=5 // pred_check_branch
        %241 = sbr.rel (%p238) target = $region44
      $region43: #{tpu_custom_call.1} parent=5 // pred_region
        %s242 = ssub.s32 %s17, 1
        // Predicated region
        $region45: #{tpu_custom_call.1} parent=43 // pred_check
          %p243 = pneg %p106
        $region46: #{tpu_custom_call.1} parent=43 // pred_check_branch
          %245 = sbr.rel (%p243) target = $region48
        $region47: #{tpu_custom_call.1} parent=43 // pred_region
          %246 = dma.done [#allocation3], 256
        $region48: #{tpu_custom_call.1} parent=43 // pred_fallthru
          _
        // Predicated region
        $region49: #{tpu_custom_call.1} parent=43 // pred_check
          %p247 = pneg %p127
        $region50: #{tpu_custom_call.1} parent=43 // pred_check_branch
          %249 = sbr.rel (%p247) target = $region52
        $region51: #{tpu_custom_call.1} parent=43 // pred_region
          %250 = dma.done [#allocation6], 1024
        $region52: #{tpu_custom_call.1} parent=43 // pred_fallthru
          _
        %p251 = scmp.lt.s32.totalorder %s22, 1
        %s252 = scalar_select %p251, %s22, 1
        %s253 = smul.addr %s252, 24
        %s254 = smul.addr %s253, 8
        %s255 = scalar_lea.vmem %s0, %s254
        %p256 = pneg %p43
        %p257 = pneg %p40
        %p258 = pneg %p64
        %p259 = pneg %p61
        %p260 = pneg %p85
        %p261 = pneg %p82
        %p262 = pneg %p106
        %p263 = pneg %p103
        %p264 = pneg %p127
        %p265 = pneg %p124
        %p266 = pneg %p148
        %p267 = pneg %p145
        %p268 = pneg %p174
        %p269 = pneg %p171
        %s270 = sand.u32 %s161, 1
        %s271 = scalar_lea.sflag [#allocation4], %s270
        %s272 = sand.u32 %s161, 1
        %s273 = smul.addr %s272, 8
        %s274 = scalar_lea.vmem [#allocation7], %s273
        %p275 = scmp.lt.s32.totalorder %s22, 1
        %s276 = scalar_select %p275, %s22, 1
        %s277 = smul.addr %s276, 24
        %s278 = smul.addr %s277, 8
        %s279 = scalar_lea.vmem %s0, %s278
        %v281 = vld [vmem:[%s279] sm:$0xff]
        %v282 = vld [vmem:[%s279 + $0x8] sm:$0xff]
        %v283 = vld [vmem:[%s279 + $0x10] sm:$0xff]
        %v284 = vld [vmem:[%s279 + $0x18] sm:$0xff]
        %v285 = vld [vmem:[%s279 + $0x20] sm:$0xff]
        %v286 = vld [vmem:[%s279 + $0x28] sm:$0xff]
        %v287 = vld [vmem:[%s279 + $0x30] sm:$0xff]
        %v288 = vld [vmem:[%s279 + $0x38] sm:$0xff]
        %v289 = vld [vmem:[%s279 + $0x40] sm:$0xff]
        %v290 = vld [vmem:[%s279 + $0x48] sm:$0xff]
        %v291 = vld [vmem:[%s279 + $0x50] sm:$0xff]
        %v292 = vld [vmem:[%s279 + $0x58] sm:$0xff]
        %v293 = vld [vmem:[%s279 + $0x60] sm:$0xff]
        %v294 = vld [vmem:[%s279 + $0x68] sm:$0xff]
        %v295 = vld [vmem:[%s279 + $0x70] sm:$0xff]
        %v296 = vld [vmem:[%s279 + $0x78] sm:$0xff]
        %v297 = vld [vmem:[%s279 + $0x80] sm:$0xff]
        %v298 = vld [vmem:[%s279 + $0x88] sm:$0xff]
        %v299 = vld [vmem:[%s279 + $0x90] sm:$0xff]
        %v300 = vld [vmem:[%s279 + $0x98] sm:$0xff]
        %v301 = vld [vmem:[%s279 + $0xa0] sm:$0xff]
        %v302 = vld [vmem:[%s279 + $0xa8] sm:$0xff]
        %v303 = vld [vmem:[%s279 + $0xb0] sm:$0xff]
        %v304 = vld [vmem:[%s279 + $0xb8] sm:$0xff]
        %v305 = vlaneseq
        %v306 = vand.u32 %v305, 127
        %307 = vset.pattern.permute.xlu0 0
        %308 = vperm.xlu0 %307, %v281
        %v309 = vpop.permute.xlu0 %308
        %310 = vset.pattern.permute.xlu0 0
        %311 = vperm.xlu0 %310, %v282
        %v312 = vpop.permute.xlu0 %311
        %313 = vset.pattern.permute.xlu0 0
        %314 = vperm.xlu0 %313, %v283
        %v315 = vpop.permute.xlu0 %314
        %316 = vset.pattern.permute.xlu0 0
        %317 = vperm.xlu0 %316, %v284
        %v318 = vpop.permute.xlu0 %317
        %319 = vset.pattern.permute.xlu0 0
        %320 = vperm.xlu0 %319, %v285
        %v321 = vpop.permute.xlu0 %320
        %322 = vset.pattern.permute.xlu0 0
        %323 = vperm.xlu0 %322, %v286
        %v324 = vpop.permute.xlu0 %323
        %325 = vset.pattern.permute.xlu0 0
        %326 = vperm.xlu0 %325, %v287
        %v327 = vpop.permute.xlu0 %326
        %328 = vset.pattern.permute.xlu0 0
        %329 = vperm.xlu0 %328, %v288
        %v330 = vpop.permute.xlu0 %329
        %331 = vset.pattern.permute.xlu0 0
        %332 = vperm.xlu0 %331, %v289
        %v333 = vpop.permute.xlu0 %332
        %334 = vset.pattern.permute.xlu0 0
        %335 = vperm.xlu0 %334, %v290
        %v336 = vpop.permute.xlu0 %335
        %337 = vset.pattern.permute.xlu0 0
        %338 = vperm.xlu0 %337, %v291
        %v339 = vpop.permute.xlu0 %338
        %340 = vset.pattern.permute.xlu0 0
        %341 = vperm.xlu0 %340, %v292
        %v342 = vpop.permute.xlu0 %341
        %343 = vset.pattern.permute.xlu0 0
        %344 = vperm.xlu0 %343, %v293
        %v345 = vpop.permute.xlu0 %344
        %346 = vset.pattern.permute.xlu0 0
        %347 = vperm.xlu0 %346, %v294
        %v348 = vpop.permute.xlu0 %347
        %349 = vset.pattern.permute.xlu0 0
        %350 = vperm.xlu0 %349, %v295
        %v351 = vpop.permute.xlu0 %350
        %352 = vset.pattern.permute.xlu0 0
        %353 = vperm.xlu0 %352, %v296
        %v354 = vpop.permute.xlu0 %353
        %355 = vset.pattern.permute.xlu0 0
        %356 = vperm.xlu0 %355, %v297
        %v357 = vpop.permute.xlu0 %356
        %358 = vset.pattern.permute.xlu0 0
        %359 = vperm.xlu0 %358, %v298
        %v360 = vpop.permute.xlu0 %359
        %361 = vset.pattern.permute.xlu0 0
        %362 = vperm.xlu0 %361, %v299
        %v363 = vpop.permute.xlu0 %362
        %364 = vset.pattern.permute.xlu0 0
        %365 = vperm.xlu0 %364, %v300
        %v366 = vpop.permute.xlu0 %365
        %367 = vset.pattern.permute.xlu0 0
        %368 = vperm.xlu0 %367, %v301
        %v369 = vpop.permute.xlu0 %368
        %370 = vset.pattern.permute.xlu0 0
        %371 = vperm.xlu0 %370, %v302
        %v372 = vpop.permute.xlu0 %371
        %373 = vset.pattern.permute.xlu0 0
        %374 = vperm.xlu0 %373, %v303
        %v375 = vpop.permute.xlu0 %374
        %376 = vset.pattern.permute.xlu0 0
        %377 = vperm.xlu0 %376, %v304
        %v378 = vpop.permute.xlu0 %377
        %vm379 = vcmp.eq.s32.totalorder %v309, %v306
        %vm380 = vcmp.eq.s32.totalorder %v312, %v306
        %vm381 = vcmp.eq.s32.totalorder %v315, %v306
        %vm382 = vcmp.eq.s32.totalorder %v318, %v306
        %vm383 = vcmp.eq.s32.totalorder %v321, %v306
        %vm384 = vcmp.eq.s32.totalorder %v324, %v306
        %vm385 = vcmp.eq.s32.totalorder %v327, %v306
        %vm386 = vcmp.eq.s32.totalorder %v330, %v306
        %vm387 = vcmp.eq.s32.totalorder %v333, %v306
        %vm388 = vcmp.eq.s32.totalorder %v336, %v306
        %vm389 = vcmp.eq.s32.totalorder %v339, %v306
        %vm390 = vcmp.eq.s32.totalorder %v342, %v306
        %vm391 = vcmp.eq.s32.totalorder %v345, %v306
        %vm392 = vcmp.eq.s32.totalorder %v348, %v306
        %vm393 = vcmp.eq.s32.totalorder %v351, %v306
        %vm394 = vcmp.eq.s32.totalorder %v354, %v306
        %vm395 = vcmp.eq.s32.totalorder %v357, %v306
        %vm396 = vcmp.eq.s32.totalorder %v360, %v306
        %vm397 = vcmp.eq.s32.totalorder %v363, %v306
        %vm398 = vcmp.eq.s32.totalorder %v366, %v306
        %vm399 = vcmp.eq.s32.totalorder %v369, %v306
        %vm400 = vcmp.eq.s32.totalorder %v372, %v306
        %vm401 = vcmp.eq.s32.totalorder %v375, %v306
        %vm402 = vcmp.eq.s32.totalorder %v378, %v306
        %v403 = vsel %vm379, 1.0, 0.0
        %v404 = vsel %vm380, 1.0, 0.0
        %v405 = vsel %vm381, 1.0, 0.0
        %v406 = vsel %vm382, 1.0, 0.0
        %v407 = vsel %vm383, 1.0, 0.0
        %v408 = vsel %vm384, 1.0, 0.0
        %v409 = vsel %vm385, 1.0, 0.0
        %v410 = vsel %vm386, 1.0, 0.0
        %v411 = vsel %vm387, 1.0, 0.0
        %v412 = vsel %vm388, 1.0, 0.0
        %v413 = vsel %vm389, 1.0, 0.0
        %v414 = vsel %vm390, 1.0, 0.0
        %v415 = vsel %vm391, 1.0, 0.0
        %v416 = vsel %vm392, 1.0, 0.0
        %v417 = vsel %vm393, 1.0, 0.0
        %v418 = vsel %vm394, 1.0, 0.0
        %v419 = vsel %vm395, 1.0, 0.0
        %v420 = vsel %vm396, 1.0, 0.0
        %v421 = vsel %vm397, 1.0, 0.0
        %v422 = vsel %vm398, 1.0, 0.0
        %v423 = vsel %vm399, 1.0, 0.0
        %v424 = vsel %vm400, 1.0, 0.0
        %v425 = vsel %vm401, 1.0, 0.0
        %v426 = vsel %vm402, 1.0, 0.0
        %v427 = vpack.c.bf16 %v404, %v403
        %v428 = vpack.c.bf16 %v406, %v405
        %v429 = vpack.c.bf16 %v408, %v407
        %v430 = vpack.c.bf16 %v410, %v409
        %v431 = vpack.c.bf16 %v412, %v411
        %v432 = vpack.c.bf16 %v414, %v413
        %v433 = vpack.c.bf16 %v416, %v415
        %v434 = vpack.c.bf16 %v418, %v417
        %v435 = vpack.c.bf16 %v420, %v419
        %v436 = vpack.c.bf16 %v422, %v421
        %v437 = vpack.c.bf16 %v424, %v423
        %v438 = vpack.c.bf16 %v426, %v425
        %v439 = vld [vmem:[%s1] sm:$0xf]
        %v440 = vld [vmem:[%s1 + $0x4] sm:$0xf]
        %v441 = vld [vmem:[%s1 + $0x8] sm:$0xf]
        %v442 = vld [vmem:[%s1 + $0xc] sm:$0xf]
        %v443 = vld [vmem:[%s1 + $0x10] sm:$0xf]
        %v444 = vld [vmem:[%s1 + $0x14] sm:$0xf]
        %v445 = vld [vmem:[%s1 + $0x18] sm:$0xf]
        %v446 = vld [vmem:[%s1 + $0x1c] sm:$0xf]
        %v447 = vld [vmem:[%s1 + $0x20] sm:$0xf]
        %v448 = vld [vmem:[%s1 + $0x24] sm:$0xf]
        %v449 = vld [vmem:[%s1 + $0x28] sm:$0xf]
        %v450 = vld [vmem:[%s1 + $0x2c] sm:$0xf]
        %v451 = vld [vmem:[%s1 + $0x30] sm:$0xf]
        %v452 = vld [vmem:[%s1 + $0x34] sm:$0xf]
        %v453 = vld [vmem:[%s1 + $0x38] sm:$0xf]
        %v454 = vld [vmem:[%s1 + $0x3c] sm:$0xf]
        %v471 = vunpack.c.l.b16 %v439
        %v472 = vunpack.c.l.b16 %v440
        %v473 = vunpack.c.l.b16 %v441
        %v474 = vunpack.c.l.b16 %v442
        %v475 = vunpack.c.l.b16 %v443
        %v476 = vunpack.c.l.b16 %v444
        %v477 = vunpack.c.l.b16 %v445
        %v478 = vunpack.c.l.b16 %v446
        %v479 = vunpack.c.l.b16 %v447
        %v480 = vunpack.c.l.b16 %v448
        %v481 = vunpack.c.l.b16 %v449
        %v482 = vunpack.c.l.b16 %v450
        %v483 = vunpack.c.l.b16 %v451
        %v484 = vunpack.c.l.b16 %v452
        %v485 = vunpack.c.l.b16 %v453
        %v486 = vunpack.c.l.b16 %v454
        %v487 = vpack.c.b16 %v472, %v471
        %v488 = vpack.c.b16 %v474, %v473
        %v489 = vpack.c.b16 %v476, %v475
        %v490 = vpack.c.b16 %v478, %v477
        %v491 = vpack.c.b16 %v480, %v479
        %v492 = vpack.c.b16 %v482, %v481
        %v493 = vpack.c.b16 %v484, %v483
        %v494 = vpack.c.b16 %v486, %v485
        %503 = vmatprep.subr.bf16.mxu0 0
        %504 = vmatpush1.bf16.msra.mxu0 %v494
        %505 = vmatprep.subr.bf16.mxu0 0
        %506 = vmatpush1.bf16.msra.mxu0 %v493
        %507 = vmatprep.subr.bf16.mxu0 0
        %508 = vmatpush1.bf16.msra.mxu0 %v492
        %509 = vmatprep.subr.bf16.mxu0 0
        %510 = vmatpush1.bf16.msra.mxu0 %v491
        %511 = vmatprep.subr.bf16.mxu0 0
        %512 = vmatpush1.bf16.msra.mxu0 %v490
        %513 = vmatprep.subr.bf16.mxu0 0
        %514 = vmatpush1.bf16.msra.mxu0 %v489
        %515 = vmatprep.subr.bf16.mxu0 0
        %516 = vmatpush1.bf16.msra.mxu0 %v488
        %517 = vmatprep.subr.bf16.mxu0 0
        %518 = vmatpush1.bf16.msra.mxu0 %v487
        %519 = vmatprep.subr.bf16.mxu0 0
        %520 = vmatpush2.bf16.msra.mxu0 0
        %521 = vmatprep.subr.bf16.mxu0 0
        %522 = vmatpush2.bf16.msra.mxu0 0
        %523 = vmatprep.subr.bf16.mxu0 0
        %524 = vmatpush2.bf16.msra.mxu0 0
        %525 = vmatprep.subr.bf16.mxu0 0
        %526 = vmatpush2.bf16.msra.mxu0 0
        %527 = vmatprep.subr.bf16.mxu0 0
        %528 = vmatpush2.bf16.msra.mxu0 0
        %529 = vmatprep.subr.bf16.mxu0 0
        %530 = vmatpush2.bf16.msra.mxu0 0
        %531 = vmatprep.subr.bf16.mxu0 0
        %532 = vmatpush2.bf16.msra.mxu0 0
        %533 = vmatprep.subr.bf16.mxu0 0
        %534 = vmatpush2.bf16.msra.mxu0 0
        %535 = vmatprep.mubr.bf16.mxu0 0
        %536 = vmatmul.mubr.bf16.gmra.mxu0 %v427
        %v537 = vpop.f32.mrf.mxu0
        %v538 = vadd.f32 0.0, %v537
        %v539 = vpop.f32.mrf.mxu0
        %v540 = vpop.f32.mrf.mxu0
        %v541 = vadd.f32 0.0, %v540
        %v542 = vpop.f32.mrf.mxu0
        %543 = vmatprep.mubr.bf16.mxu0 0
        %544 = vmatmul.mubr.bf16.gmra.mxu0 %v428
        %v545 = vpop.f32.mrf.mxu0
        %v546 = vadd.f32 0.0, %v545
        %v547 = vpop.f32.mrf.mxu0
        %v548 = vpop.f32.mrf.mxu0
        %v549 = vadd.f32 0.0, %v548
        %v550 = vpop.f32.mrf.mxu0
        %551 = vmatprep.mubr.bf16.mxu0 0
        %552 = vmatmul.mubr.bf16.gmra.mxu0 %v429
        %v553 = vpop.f32.mrf.mxu0
        %v554 = vadd.f32 0.0, %v553
        %v555 = vpop.f32.mrf.mxu0
        %v556 = vpop.f32.mrf.mxu0
        %v557 = vadd.f32 0.0, %v556
        %v558 = vpop.f32.mrf.mxu0
        %559 = vmatprep.mubr.bf16.mxu0 0
        %560 = vmatmul.mubr.bf16.gmra.mxu0 %v430
        %v561 = vpop.f32.mrf.mxu0
        %v562 = vadd.f32 0.0, %v561
        %v563 = vpop.f32.mrf.mxu0
        %v564 = vpop.f32.mrf.mxu0
        %v565 = vadd.f32 0.0, %v564
        %v566 = vpop.f32.mrf.mxu0
        %567 = vmatprep.mubr.bf16.mxu0 0
        %568 = vmatmul.mubr.bf16.gmra.mxu0 %v431
        %v569 = vpop.f32.mrf.mxu0
        %v570 = vadd.f32 0.0, %v569
        %v571 = vpop.f32.mrf.mxu0
        %v572 = vpop.f32.mrf.mxu0
        %v573 = vadd.f32 0.0, %v572
        %v574 = vpop.f32.mrf.mxu0
        %575 = vmatprep.mubr.bf16.mxu0 0
        %576 = vmatmul.mubr.bf16.gmra.mxu0 %v432
        %v577 = vpop.f32.mrf.mxu0
        %v578 = vadd.f32 0.0, %v577
        %v579 = vpop.f32.mrf.mxu0
        %v580 = vpop.f32.mrf.mxu0
        %v581 = vadd.f32 0.0, %v580
        %v582 = vpop.f32.mrf.mxu0
        %583 = vmatprep.mubr.bf16.mxu0 0
        %584 = vmatmul.mubr.bf16.gmra.mxu0 %v433
        %v585 = vpop.f32.mrf.mxu0
        %v586 = vadd.f32 0.0, %v585
        %v587 = vpop.f32.mrf.mxu0
        %v588 = vpop.f32.mrf.mxu0
        %v589 = vadd.f32 0.0, %v588
        %v590 = vpop.f32.mrf.mxu0
        %591 = vmatprep.mubr.bf16.mxu0 0
        %592 = vmatmul.mubr.bf16.gmra.mxu0 %v434
        %v593 = vpop.f32.mrf.mxu0
        %v594 = vadd.f32 0.0, %v593
        %v595 = vpop.f32.mrf.mxu0
        %v596 = vpop.f32.mrf.mxu0
        %v597 = vadd.f32 0.0, %v596
        %v598 = vpop.f32.mrf.mxu0
        %599 = vmatprep.mubr.bf16.mxu0 0
        %600 = vmatmul.mubr.bf16.gmra.mxu0 %v435
        %v601 = vpop.f32.mrf.mxu0
        %v602 = vadd.f32 0.0, %v601
        %v603 = vpop.f32.mrf.mxu0
        %v604 = vpop.f32.mrf.mxu0
        %v605 = vadd.f32 0.0, %v604
        %v606 = vpop.f32.mrf.mxu0
        %607 = vmatprep.mubr.bf16.mxu0 0
        %608 = vmatmul.mubr.bf16.gmra.mxu0 %v436
        %v609 = vpop.f32.mrf.mxu0
        %v610 = vadd.f32 0.0, %v609
        %v611 = vpop.f32.mrf.mxu0
        %v612 = vpop.f32.mrf.mxu0
        %v613 = vadd.f32 0.0, %v612
        %v614 = vpop.f32.mrf.mxu0
        %615 = vmatprep.mubr.bf16.mxu0 0
        %616 = vmatmul.mubr.bf16.gmra.mxu0 %v437
        %v617 = vpop.f32.mrf.mxu0
        %v618 = vadd.f32 0.0, %v617
        %v619 = vpop.f32.mrf.mxu0
        %v620 = vpop.f32.mrf.mxu0
        %v621 = vadd.f32 0.0, %v620
        %v622 = vpop.f32.mrf.mxu0
        %623 = vmatprep.mubr.bf16.mxu0 0
        %624 = vmatmul.mubr.bf16.gmra.mxu0 %v438
        %v625 = vpop.f32.mrf.mxu0
        %v626 = vadd.f32 0.0, %v625
        %v627 = vpop.f32.mrf.mxu0
        %v628 = vpop.f32.mrf.mxu0
        %v629 = vadd.f32 0.0, %v628
        %v630 = vpop.f32.mrf.mxu0
        %631 = vdwg.mxu0
        %v632 = vpack.c.bf16 %v541, %v538
        %v633 = vpack.c.bf16 %v549, %v546
        %v634 = vpack.c.bf16 %v557, %v554
        %v635 = vpack.c.bf16 %v565, %v562
        %v636 = vpack.c.bf16 %v573, %v570
        %v637 = vpack.c.bf16 %v581, %v578
        %v638 = vpack.c.bf16 %v589, %v586
        %v639 = vpack.c.bf16 %v597, %v594
        %v640 = vpack.c.bf16 %v605, %v602
        %v641 = vpack.c.bf16 %v613, %v610
        %v642 = vpack.c.bf16 %v621, %v618
        %v643 = vpack.c.bf16 %v629, %v626
        %v656 = vunpack.c.l.b16 %v632
        %v657 = vunpack.c.h.b16 %v632
        %v658 = vunpack.c.l.b16 %v633
        %v659 = vunpack.c.h.b16 %v633
        %v660 = vunpack.c.l.b16 %v634
        %v661 = vunpack.c.h.b16 %v634
        %v662 = vunpack.c.l.b16 %v635
        %v663 = vunpack.c.h.b16 %v635
        %v664 = vunpack.c.l.b16 %v636
        %v665 = vunpack.c.h.b16 %v636
        %v666 = vunpack.c.l.b16 %v637
        %v667 = vunpack.c.h.b16 %v637
        %v668 = vunpack.c.l.b16 %v638
        %v669 = vunpack.c.h.b16 %v638
        %v670 = vunpack.c.l.b16 %v639
        %v671 = vunpack.c.h.b16 %v639
        %v672 = vunpack.c.l.b16 %v640
        %v673 = vunpack.c.h.b16 %v640
        %v674 = vunpack.c.l.b16 %v641
        %v675 = vunpack.c.h.b16 %v641
        %v676 = vunpack.c.l.b16 %v642
        %v677 = vunpack.c.h.b16 %v642
        %v678 = vunpack.c.l.b16 %v643
        %v679 = vunpack.c.h.b16 %v643
        %v680 = vpack.c.b16 %v656, %v656
        %v681 = vpack.c.b16 %v657, %v657
        %v682 = vpack.c.b16 %v658, %v658
        %v683 = vpack.c.b16 %v659, %v659
        %v684 = vpack.c.b16 %v660, %v660
        %v685 = vpack.c.b16 %v661, %v661
        %v686 = vpack.c.b16 %v662, %v662
        %v687 = vpack.c.b16 %v663, %v663
        %v688 = vpack.c.b16 %v664, %v664
        %v689 = vpack.c.b16 %v665, %v665
        %v690 = vpack.c.b16 %v666, %v666
        %v691 = vpack.c.b16 %v667, %v667
        %v692 = vpack.c.b16 %v668, %v668
        %v693 = vpack.c.b16 %v669, %v669
        %v694 = vpack.c.b16 %v670, %v670
        %v695 = vpack.c.b16 %v671, %v671
        %v696 = vpack.c.b16 %v672, %v672
        %v697 = vpack.c.b16 %v673, %v673
        %v698 = vpack.c.b16 %v674, %v674
        %v699 = vpack.c.b16 %v675, %v675
        %v700 = vpack.c.b16 %v676, %v676
        %v701 = vpack.c.b16 %v677, %v677
        %v702 = vpack.c.b16 %v678, %v678
        %v703 = vpack.c.b16 %v679, %v679
        %v704 = vld [vmem:[#allocation2] sm:$0xff]
        %v705 = vld [vmem:[#allocation2 + $0x8] sm:$0xff]
        %v706 = vld [vmem:[%s2] sm:$0xf]
        %v707 = vld [vmem:[%s2 + $0x4] sm:$0xf]
        %v708 = vld [vmem:[%s2 + $0x8] sm:$0xf]
        %v709 = vld [vmem:[%s2 + $0xc] sm:$0xf]
        %v710 = vld [vmem:[%s2 + $0x10] sm:$0xf]
        %v711 = vld [vmem:[%s2 + $0x14] sm:$0xf]
        %v712 = vld [vmem:[%s2 + $0x18] sm:$0xf]
        %v713 = vld [vmem:[%s2 + $0x1c] sm:$0xf]
        %v714 = vld [vmem:[%s2 + $0x20] sm:$0xf]
        %v715 = vld [vmem:[%s2 + $0x24] sm:$0xf]
        %v716 = vld [vmem:[%s2 + $0x28] sm:$0xf]
        %v717 = vld [vmem:[%s2 + $0x2c] sm:$0xf]
        %v718 = vld [vmem:[%s2 + $0x30] sm:$0xf]
        %v719 = vld [vmem:[%s2 + $0x34] sm:$0xf]
        %v720 = vld [vmem:[%s2 + $0x38] sm:$0xf]
        %v721 = vld [vmem:[%s2 + $0x3c] sm:$0xf]
        %vm722 = vsmask.f32 3328
        %vm723 = vsmask.f32 7440
        %vm724 = vmor %vm722, %vm723
        %v726 = vshrl.u32 %v680, 16
        %v728 = vrot.slane %v726, 4
        %v729 = vshll.u32 %v680, 16
        %v731 = vrot.slane %v729, 5
        %v732 = vor.u32 %v728, %v731
        %v733 = vrot.slane %v732, 4
        %v735 = vshll.u32 %v681, 16
        %v737 = vrot.slane %v735, 5
        %v738 = vsel %vm724, %v733, %v737
        %v739 = vshrl.u32 %v681, 16
        %v741 = vrot.slane %v739, 4
        %v742 = vor.u32 %v741, %v737
        %v743 = vrot.slane %v742, 4
        %v745 = vshll.u32 %v682, 16
        %v747 = vrot.slane %v745, 5
        %v748 = vsel %vm724, %v743, %v747
        %v750 = vshrl.u32 %v683, 16
        %v752 = vrot.slane %v750, 4
        %v753 = vshll.u32 %v683, 16
        %v755 = vrot.slane %v753, 5
        %v756 = vor.u32 %v752, %v755
        %v757 = vrot.slane %v756, 4
        %v759 = vshll.u32 %v684, 16
        %v761 = vrot.slane %v759, 5
        %v762 = vsel %vm724, %v757, %v761
        %v763 = vshrl.u32 %v684, 16
        %v765 = vrot.slane %v763, 4
        %v766 = vor.u32 %v765, %v761
        %v767 = vrot.slane %v766, 4
        %v769 = vshll.u32 %v685, 16
        %v771 = vrot.slane %v769, 5
        %v772 = vsel %vm724, %v767, %v771
        %v774 = vshrl.u32 %v686, 16
        %v776 = vrot.slane %v774, 4
        %v777 = vshll.u32 %v686, 16
        %v779 = vrot.slane %v777, 5
        %v780 = vor.u32 %v776, %v779
        %v781 = vrot.slane %v780, 4
        %v783 = vshll.u32 %v687, 16
        %v785 = vrot.slane %v783, 5
        %v786 = vsel %vm724, %v781, %v785
        %v787 = vshrl.u32 %v687, 16
        %v789 = vrot.slane %v787, 4
        %v790 = vor.u32 %v789, %v785
        %v791 = vrot.slane %v790, 4
        %v793 = vshll.u32 %v688, 16
        %v795 = vrot.slane %v793, 5
        %v796 = vsel %vm724, %v791, %v795
        %v798 = vshrl.u32 %v689, 16
        %v800 = vrot.slane %v798, 4
        %v801 = vshll.u32 %v689, 16
        %v803 = vrot.slane %v801, 5
        %v804 = vor.u32 %v800, %v803
        %v805 = vrot.slane %v804, 4
        %v807 = vshll.u32 %v690, 16
        %v809 = vrot.slane %v807, 5
        %v810 = vsel %vm724, %v805, %v809
        %v811 = vshrl.u32 %v690, 16
        %v813 = vrot.slane %v811, 4
        %v814 = vor.u32 %v813, %v809
        %v815 = vrot.slane %v814, 4
        %v817 = vshll.u32 %v691, 16
        %v819 = vrot.slane %v817, 5
        %v820 = vsel %vm724, %v815, %v819
        %v822 = vshrl.u32 %v692, 16
        %v824 = vrot.slane %v822, 4
        %v825 = vshll.u32 %v692, 16
        %v827 = vrot.slane %v825, 5
        %v828 = vor.u32 %v824, %v827
        %v829 = vrot.slane %v828, 4
        %v831 = vshll.u32 %v693, 16
        %v833 = vrot.slane %v831, 5
        %v834 = vsel %vm724, %v829, %v833
        %v835 = vshrl.u32 %v693, 16
        %v837 = vrot.slane %v835, 4
        %v838 = vor.u32 %v837, %v833
        %v839 = vrot.slane %v838, 4
        %v841 = vshll.u32 %v694, 16
        %v843 = vrot.slane %v841, 5
        %v844 = vsel %vm724, %v839, %v843
        %v846 = vshrl.u32 %v695, 16
        %v848 = vrot.slane %v846, 4
        %v849 = vshll.u32 %v695, 16
        %v851 = vrot.slane %v849, 5
        %v852 = vor.u32 %v848, %v851
        %v853 = vrot.slane %v852, 4
        %v855 = vshll.u32 %v696, 16
        %v857 = vrot.slane %v855, 5
        %v858 = vsel %vm724, %v853, %v857
        %v859 = vshrl.u32 %v696, 16
        %v861 = vrot.slane %v859, 4
        %v862 = vor.u32 %v861, %v857
        %v863 = vrot.slane %v862, 4
        %v865 = vshll.u32 %v697, 16
        %v867 = vrot.slane %v865, 5
        %v868 = vsel %vm724, %v863, %v867
        %v870 = vshrl.u32 %v698, 16
        %v872 = vrot.slane %v870, 4
        %v873 = vshll.u32 %v698, 16
        %v875 = vrot.slane %v873, 5
        %v876 = vor.u32 %v872, %v875
        %v877 = vrot.slane %v876, 4
        %v879 = vshll.u32 %v699, 16
        %v881 = vrot.slane %v879, 5
        %v882 = vsel %vm724, %v877, %v881
        %v883 = vshrl.u32 %v699, 16
        %v885 = vrot.slane %v883, 4
        %v886 = vor.u32 %v885, %v881
        %v887 = vrot.slane %v886, 4
        %v889 = vshll.u32 %v700, 16
        %v891 = vrot.slane %v889, 5
        %v892 = vsel %vm724, %v887, %v891
        %v894 = vshrl.u32 %v701, 16
        %v896 = vrot.slane %v894, 4
        %v897 = vshll.u32 %v701, 16
        %v899 = vrot.slane %v897, 5
        %v900 = vor.u32 %v896, %v899
        %v901 = vrot.slane %v900, 4
        %v903 = vshll.u32 %v702, 16
        %v905 = vrot.slane %v903, 5
        %v906 = vsel %vm724, %v901, %v905
        %v907 = vshrl.u32 %v702, 16
        %v909 = vrot.slane %v907, 4
        %v910 = vor.u32 %v909, %v905
        %v911 = vrot.slane %v910, 4
        %v913 = vshll.u32 %v703, 16
        %v915 = vrot.slane %v913, 5
        %v916 = vsel %vm724, %v911, %v915
        %s917 = scalar_lea.vmem %s2, 64
        %v918 = vld [vmem:[%s917] sm:$0xf]
        %v919 = vld [vmem:[%s917 + $0x4] sm:$0xf]
        %v920 = vld [vmem:[%s917 + $0x8] sm:$0xf]
        %v921 = vld [vmem:[%s917 + $0xc] sm:$0xf]
        %v922 = vld [vmem:[%s917 + $0x10] sm:$0xf]
        %v923 = vld [vmem:[%s917 + $0x14] sm:$0xf]
        %v924 = vld [vmem:[%s917 + $0x18] sm:$0xf]
        %v925 = vld [vmem:[%s917 + $0x1c] sm:$0xf]
        %v926 = vld [vmem:[%s917 + $0x20] sm:$0xf]
        %v927 = vld [vmem:[%s917 + $0x24] sm:$0xf]
        %v928 = vld [vmem:[%s917 + $0x28] sm:$0xf]
        %v929 = vld [vmem:[%s917 + $0x2c] sm:$0xf]
        %v930 = vld [vmem:[%s917 + $0x30] sm:$0xf]
        %v931 = vld [vmem:[%s917 + $0x34] sm:$0xf]
        %v932 = vld [vmem:[%s917 + $0x38] sm:$0xf]
        %v933 = vld [vmem:[%s917 + $0x3c] sm:$0xf]
        %v934 = vunpack.c.l.b16 %v738
        %v935 = vunpack.c.l.b16 %v748
        %v936 = vunpack.c.l.b16 %v762
        %v937 = vunpack.c.l.b16 %v772
        %v938 = vunpack.c.l.b16 %v786
        %v939 = vunpack.c.l.b16 %v796
        %v940 = vunpack.c.l.b16 %v810
        %v941 = vunpack.c.l.b16 %v820
        %v942 = vunpack.c.l.b16 %v834
        %v943 = vunpack.c.l.b16 %v844
        %v944 = vunpack.c.l.b16 %v858
        %v945 = vunpack.c.l.b16 %v868
        %v946 = vunpack.c.l.b16 %v882
        %v947 = vunpack.c.l.b16 %v892
        %v948 = vunpack.c.l.b16 %v906
        %v949 = vunpack.c.l.b16 %v916
        %v950 = vpack.c.b16 %v935, %v934
        %v951 = vpack.c.b16 %v937, %v936
        %v952 = vpack.c.b16 %v939, %v938
        %v953 = vpack.c.b16 %v941, %v940
        %v954 = vpack.c.b16 %v943, %v942
        %v955 = vpack.c.b16 %v945, %v944
        %v956 = vpack.c.b16 %v947, %v946
        %v957 = vpack.c.b16 %v949, %v948
        %v982 = vunpack.c.l.b16 %v918
        %v983 = vunpack.c.l.b16 %v919
        %v984 = vunpack.c.l.b16 %v920
        %v985 = vunpack.c.l.b16 %v921
        %v986 = vunpack.c.l.b16 %v922
        %v987 = vunpack.c.l.b16 %v923
        %v988 = vunpack.c.l.b16 %v924
        %v989 = vunpack.c.l.b16 %v925
        %v990 = vunpack.c.l.b16 %v926
        %v991 = vunpack.c.l.b16 %v927
        %v992 = vunpack.c.l.b16 %v928
        %v993 = vunpack.c.l.b16 %v929
        %v994 = vunpack.c.l.b16 %v930
        %v995 = vunpack.c.l.b16 %v931
        %v996 = vunpack.c.l.b16 %v932
        %v997 = vunpack.c.l.b16 %v933
        %v998 = vpack.c.b16 %v983, %v982
        %v999 = vpack.c.b16 %v985, %v984
        %v1000 = vpack.c.b16 %v987, %v986
        %v1001 = vpack.c.b16 %v989, %v988
        %v1002 = vpack.c.b16 %v991, %v990
        %v1003 = vpack.c.b16 %v993, %v992
        %v1004 = vpack.c.b16 %v995, %v994
        %v1005 = vpack.c.b16 %v997, %v996
        %1014 = vmatprep.subr.bf16.mxu0 0
        %1015 = vmatpush1.bf16.msra.mxu0 %v1005
        %1016 = vmatprep.subr.bf16.mxu0 0
        %1017 = vmatpush1.bf16.msra.mxu0 %v1004
        %1018 = vmatprep.subr.bf16.mxu0 0
        %1019 = vmatpush1.bf16.msra.mxu0 %v1003
        %1020 = vmatprep.subr.bf16.mxu0 0
        %1021 = vmatpush1.bf16.msra.mxu0 %v1002
        %1022 = vmatprep.subr.bf16.mxu0 0
        %1023 = vmatpush1.bf16.msra.mxu0 %v1001
        %1024 = vmatprep.subr.bf16.mxu0 0
        %1025 = vmatpush1.bf16.msra.mxu0 %v1000
        %1026 = vmatprep.subr.bf16.mxu0 0
        %1027 = vmatpush1.bf16.msra.mxu0 %v999
        %1028 = vmatprep.subr.bf16.mxu0 0
        %1029 = vmatpush1.bf16.msra.mxu0 %v998
        %1030 = vmatprep.subr.bf16.mxu0 0
        %1031 = vmatpush2.bf16.msra.mxu0 0
        %1032 = vmatprep.subr.bf16.mxu0 0
        %1033 = vmatpush2.bf16.msra.mxu0 0
        %1034 = vmatprep.subr.bf16.mxu0 0
        %1035 = vmatpush2.bf16.msra.mxu0 0
        %1036 = vmatprep.subr.bf16.mxu0 0
        %1037 = vmatpush2.bf16.msra.mxu0 0
        %1038 = vmatprep.subr.bf16.mxu0 0
        %1039 = vmatpush2.bf16.msra.mxu0 0
        %1040 = vmatprep.subr.bf16.mxu0 0
        %1041 = vmatpush2.bf16.msra.mxu0 0
        %1042 = vmatprep.subr.bf16.mxu0 0
        %1043 = vmatpush2.bf16.msra.mxu0 0
        %1044 = vmatprep.subr.bf16.mxu0 0
        %1045 = vmatpush2.bf16.msra.mxu0 0
        %1046 = vmatprep.mubr.bf16.mxu0 0
        %1047 = vmatmul.mubr.bf16.gmra.mxu0 %v950
        %v1048 = vpop.f32.mrf.mxu0
        %v1049 = vadd.f32 0.0, %v1048
        %v1050 = vpop.f32.mrf.mxu0
        %v1051 = vpop.f32.mrf.mxu0
        %v1052 = vadd.f32 0.0, %v1051
        %v1053 = vpop.f32.mrf.mxu0
        %1054 = vmatprep.mubr.bf16.mxu0 0
        %1055 = vmatmul.mubr.bf16.gmra.mxu0 %v951
        %v1056 = vpop.f32.mrf.mxu0
        %v1057 = vadd.f32 0.0, %v1056
        %v1058 = vpop.f32.mrf.mxu0
        %v1059 = vpop.f32.mrf.mxu0
        %v1060 = vadd.f32 0.0, %v1059
        %v1061 = vpop.f32.mrf.mxu0
        %1062 = vmatprep.mubr.bf16.mxu0 0
        %1063 = vmatmul.mubr.bf16.gmra.mxu0 %v952
        %v1064 = vpop.f32.mrf.mxu0
        %v1065 = vadd.f32 0.0, %v1064
        %v1066 = vpop.f32.mrf.mxu0
        %v1067 = vpop.f32.mrf.mxu0
        %v1068 = vadd.f32 0.0, %v1067
        %v1069 = vpop.f32.mrf.mxu0
        %1070 = vmatprep.mubr.bf16.mxu0 0
        %1071 = vmatmul.mubr.bf16.gmra.mxu0 %v953
        %v1072 = vpop.f32.mrf.mxu0
        %v1073 = vadd.f32 0.0, %v1072
        %v1074 = vpop.f32.mrf.mxu0
        %v1075 = vpop.f32.mrf.mxu0
        %v1076 = vadd.f32 0.0, %v1075
        %v1077 = vpop.f32.mrf.mxu0
        %1078 = vmatprep.mubr.bf16.mxu0 0
        %1079 = vmatmul.mubr.bf16.gmra.mxu0 %v954
        %v1080 = vpop.f32.mrf.mxu0
        %v1081 = vadd.f32 0.0, %v1080
        %v1082 = vpop.f32.mrf.mxu0
        %v1083 = vpop.f32.mrf.mxu0
        %v1084 = vadd.f32 0.0, %v1083
        %v1085 = vpop.f32.mrf.mxu0
        %1086 = vmatprep.mubr.bf16.mxu0 0
        %1087 = vmatmul.mubr.bf16.gmra.mxu0 %v955
        %v1088 = vpop.f32.mrf.mxu0
        %v1089 = vadd.f32 0.0, %v1088
        %v1090 = vpop.f32.mrf.mxu0
        %v1091 = vpop.f32.mrf.mxu0
        %v1092 = vadd.f32 0.0, %v1091
        %v1093 = vpop.f32.mrf.mxu0
        %1094 = vmatprep.mubr.bf16.mxu0 0
        %1095 = vmatmul.mubr.bf16.gmra.mxu0 %v956
        %v1096 = vpop.f32.mrf.mxu0
        %v1097 = vadd.f32 0.0, %v1096
        %v1098 = vpop.f32.mrf.mxu0
        %v1099 = vpop.f32.mrf.mxu0
        %v1100 = vadd.f32 0.0, %v1099
        %v1101 = vpop.f32.mrf.mxu0
        %1102 = vmatprep.mubr.bf16.mxu0 0
        %1103 = vmatmul.mubr.bf16.gmra.mxu0 %v957
        %v1104 = vpop.f32.mrf.mxu0
        %v1105 = vadd.f32 0.0, %v1104
        %v1106 = vpop.f32.mrf.mxu0
        %v1107 = vpop.f32.mrf.mxu0
        %v1108 = vadd.f32 0.0, %v1107
        %v1109 = vpop.f32.mrf.mxu0
        %1110 = vdwg.mxu0
        %v1111 = vpack.c.b16 %v657, %v656
        %v1112 = vpack.c.b16 %v660, %v659
        %v1113 = vpack.c.b16 %v663, %v662
        %v1114 = vpack.c.b16 %v666, %v665
        %v1115 = vpack.c.b16 %v669, %v668
        %v1116 = vpack.c.b16 %v672, %v671
        %v1117 = vpack.c.b16 %v675, %v674
        %v1118 = vpack.c.b16 %v678, %v677
        %v1143 = vunpack.c.l.b16 %v706
        %v1144 = vunpack.c.l.b16 %v707
        %v1145 = vunpack.c.l.b16 %v708
        %v1146 = vunpack.c.l.b16 %v709
        %v1147 = vunpack.c.l.b16 %v710
        %v1148 = vunpack.c.l.b16 %v711
        %v1149 = vunpack.c.l.b16 %v712
        %v1150 = vunpack.c.l.b16 %v713
        %v1151 = vunpack.c.l.b16 %v714
        %v1152 = vunpack.c.l.b16 %v715
        %v1153 = vunpack.c.l.b16 %v716
        %v1154 = vunpack.c.l.b16 %v717
        %v1155 = vunpack.c.l.b16 %v718
        %v1156 = vunpack.c.l.b16 %v719
        %v1157 = vunpack.c.l.b16 %v720
        %v1158 = vunpack.c.l.b16 %v721
        %v1159 = vpack.c.b16 %v1144, %v1143
        %v1160 = vpack.c.b16 %v1146, %v1145
        %v1161 = vpack.c.b16 %v1148, %v1147
        %v1162 = vpack.c.b16 %v1150, %v1149
        %v1163 = vpack.c.b16 %v1152, %v1151
        %v1164 = vpack.c.b16 %v1154, %v1153
        %v1165 = vpack.c.b16 %v1156, %v1155
        %v1166 = vpack.c.b16 %v1158, %v1157
        %1175 = vmatprep.subr.bf16.mxu0 0
        %1176 = vmatpush1.bf16.msra.mxu0 %v1166
        %1177 = vmatprep.subr.bf16.mxu0 0
        %1178 = vmatpush1.bf16.msra.mxu0 %v1165
        %1179 = vmatprep.subr.bf16.mxu0 0
        %1180 = vmatpush1.bf16.msra.mxu0 %v1164
        %1181 = vmatprep.subr.bf16.mxu0 0
        %1182 = vmatpush1.bf16.msra.mxu0 %v1163
        %1183 = vmatprep.subr.bf16.mxu0 0
        %1184 = vmatpush1.bf16.msra.mxu0 %v1162
        %1185 = vmatprep.subr.bf16.mxu0 0
        %1186 = vmatpush1.bf16.msra.mxu0 %v1161
        %1187 = vmatprep.subr.bf16.mxu0 0
        %1188 = vmatpush1.bf16.msra.mxu0 %v1160
        %1189 = vmatprep.subr.bf16.mxu0 0
        %1190 = vmatpush1.bf16.msra.mxu0 %v1159
        %1191 = vmatprep.subr.bf16.mxu0 0
        %1192 = vmatpush2.bf16.msra.mxu0 0
        %1193 = vmatprep.subr.bf16.mxu0 0
        %1194 = vmatpush2.bf16.msra.mxu0 0
        %1195 = vmatprep.subr.bf16.mxu0 0
        %1196 = vmatpush2.bf16.msra.mxu0 0
        %1197 = vmatprep.subr.bf16.mxu0 0
        %1198 = vmatpush2.bf16.msra.mxu0 0
        %1199 = vmatprep.subr.bf16.mxu0 0
        %1200 = vmatpush2.bf16.msra.mxu0 0
        %1201 = vmatprep.subr.bf16.mxu0 0
        %1202 = vmatpush2.bf16.msra.mxu0 0
        %1203 = vmatprep.subr.bf16.mxu0 0
        %1204 = vmatpush2.bf16.msra.mxu0 0
        %1205 = vmatprep.subr.bf16.mxu0 0
        %1206 = vmatpush2.bf16.msra.mxu0 0
        %1207 = vmatprep.mubr.bf16.mxu0 0
        %1208 = vmatmul.mubr.bf16.gmra.mxu0 %v1111
        %v1209 = vpop.f32.mrf.mxu0
        %v1210 = vadd.f32 %v1049, %v1209
        %v1211 = vpop.f32.mrf.mxu0
        %v1212 = vpop.f32.mrf.mxu0
        %v1213 = vadd.f32 %v1052, %v1212
        %v1214 = vpop.f32.mrf.mxu0
        %1215 = vmatprep.mubr.bf16.mxu0 0
        %1216 = vmatmul.mubr.bf16.gmra.mxu0 %v1112
        %v1217 = vpop.f32.mrf.mxu0
        %v1218 = vadd.f32 %v1057, %v1217
        %v1219 = vpop.f32.mrf.mxu0
        %v1220 = vpop.f32.mrf.mxu0
        %v1221 = vadd.f32 %v1060, %v1220
        %v1222 = vpop.f32.mrf.mxu0
        %1223 = vmatprep.mubr.bf16.mxu0 0
        %1224 = vmatmul.mubr.bf16.gmra.mxu0 %v1113
        %v1225 = vpop.f32.mrf.mxu0
        %v1226 = vadd.f32 %v1065, %v1225
        %v1227 = vpop.f32.mrf.mxu0
        %v1228 = vpop.f32.mrf.mxu0
        %v1229 = vadd.f32 %v1068, %v1228
        %v1230 = vpop.f32.mrf.mxu0
        %1231 = vmatprep.mubr.bf16.mxu0 0
        %1232 = vmatmul.mubr.bf16.gmra.mxu0 %v1114
        %v1233 = vpop.f32.mrf.mxu0
        %v1234 = vadd.f32 %v1073, %v1233
        %v1235 = vpop.f32.mrf.mxu0
        %v1236 = vpop.f32.mrf.mxu0
        %v1237 = vadd.f32 %v1076, %v1236
        %v1238 = vpop.f32.mrf.mxu0
        %1239 = vmatprep.mubr.bf16.mxu0 0
        %1240 = vmatmul.mubr.bf16.gmra.mxu0 %v1115
        %v1241 = vpop.f32.mrf.mxu0
        %v1242 = vadd.f32 %v1081, %v1241
        %v1243 = vpop.f32.mrf.mxu0
        %v1244 = vpop.f32.mrf.mxu0
        %v1245 = vadd.f32 %v1084, %v1244
        %v1246 = vpop.f32.mrf.mxu0
        %1247 = vmatprep.mubr.bf16.mxu0 0
        %1248 = vmatmul.mubr.bf16.gmra.mxu0 %v1116
        %v1249 = vpop.f32.mrf.mxu0
        %v1250 = vadd.f32 %v1089, %v1249
        %v1251 = vpop.f32.mrf.mxu0
        %v1252 = vpop.f32.mrf.mxu0
        %v1253 = vadd.f32 %v1092, %v1252
        %v1254 = vpop.f32.mrf.mxu0
        %1255 = vmatprep.mubr.bf16.mxu0 0
        %1256 = vmatmul.mubr.bf16.gmra.mxu0 %v1117
        %v1257 = vpop.f32.mrf.mxu0
        %v1258 = vadd.f32 %v1097, %v1257
        %v1259 = vpop.f32.mrf.mxu0
        %v1260 = vpop.f32.mrf.mxu0
        %v1261 = vadd.f32 %v1100, %v1260
        %v1262 = vpop.f32.mrf.mxu0
        %1263 = vmatprep.mubr.bf16.mxu0 0
        %1264 = vmatmul.mubr.bf16.gmra.mxu0 %v1118
        %v1265 = vpop.f32.mrf.mxu0
        %v1266 = vadd.f32 %v1105, %v1265
        %v1267 = vpop.f32.mrf.mxu0
        %v1268 = vpop.f32.mrf.mxu0
        %v1269 = vadd.f32 %v1108, %v1268
        %v1270 = vpop.f32.mrf.mxu0
        %1271 = vdwg.mxu0
        %vm1272 = vcmask 1042432
        %vm1273 = vcmask 1046532
        %vm1274 = vmor %vm1272, %vm1273
        %v1275 = vrot.slane %v680, 5
        %v1276 = vrot.slane %v1275, 4
        %v1277 = vrot.slane %v681, 5
        %v1278 = vsel %vm1274, %v1276, %v1277
        %v1279 = vrot.slane %v1277, 4
        %v1280 = vrot.slane %v682, 5
        %v1281 = vsel %vm1274, %v1279, %v1280
        %v1282 = vrot.slane %v683, 5
        %v1283 = vrot.slane %v1282, 4
        %v1284 = vrot.slane %v684, 5
        %v1285 = vsel %vm1274, %v1283, %v1284
        %v1286 = vrot.slane %v1284, 4
        %v1287 = vrot.slane %v685, 5
        %v1288 = vsel %vm1274, %v1286, %v1287
        %v1289 = vrot.slane %v686, 5
        %v1290 = vrot.slane %v1289, 4
        %v1291 = vrot.slane %v687, 5
        %v1292 = vsel %vm1274, %v1290, %v1291
        %v1293 = vrot.slane %v1291, 4
        %v1294 = vrot.slane %v688, 5
        %v1295 = vsel %vm1274, %v1293, %v1294
        %v1296 = vrot.slane %v689, 5
        %v1297 = vrot.slane %v1296, 4
        %v1298 = vrot.slane %v690, 5
        %v1299 = vsel %vm1274, %v1297, %v1298
        %v1300 = vrot.slane %v1298, 4
        %v1301 = vrot.slane %v691, 5
        %v1302 = vsel %vm1274, %v1300, %v1301
        %v1303 = vrot.slane %v692, 5
        %v1304 = vrot.slane %v1303, 4
        %v1305 = vrot.slane %v693, 5
        %v1306 = vsel %vm1274, %v1304, %v1305
        %v1307 = vrot.slane %v1305, 4
        %v1308 = vrot.slane %v694, 5
        %v1309 = vsel %vm1274, %v1307, %v1308
        %v1310 = vrot.slane %v695, 5
        %v1311 = vrot.slane %v1310, 4
        %v1312 = vrot.slane %v696, 5
        %v1313 = vsel %vm1274, %v1311, %v1312
        %v1314 = vrot.slane %v1312, 4
        %v1315 = vrot.slane %v697, 5
        %v1316 = vsel %vm1274, %v1314, %v1315
        %v1317 = vrot.slane %v698, 5
        %v1318 = vrot.slane %v1317, 4
        %v1319 = vrot.slane %v699, 5
        %v1320 = vsel %vm1274, %v1318, %v1319
        %v1321 = vrot.slane %v1319, 4
        %v1322 = vrot.slane %v700, 5
        %v1323 = vsel %vm1274, %v1321, %v1322
        %v1324 = vrot.slane %v701, 5
        %v1325 = vrot.slane %v1324, 4
        %v1326 = vrot.slane %v702, 5
        %v1327 = vsel %vm1274, %v1325, %v1326
        %v1328 = vrot.slane %v1326, 4
        %v1329 = vrot.slane %v703, 5
        %v1330 = vsel %vm1274, %v1328, %v1329
        %s1331 = scalar_lea.vmem %s2, 128
        %v1332 = vld [vmem:[%s1331] sm:$0xf]
        %v1333 = vld [vmem:[%s1331 + $0x4] sm:$0xf]
        %v1334 = vld [vmem:[%s1331 + $0x8] sm:$0xf]
        %v1335 = vld [vmem:[%s1331 + $0xc] sm:$0xf]
        %v1336 = vld [vmem:[%s1331 + $0x10] sm:$0xf]
        %v1337 = vld [vmem:[%s1331 + $0x14] sm:$0xf]
        %v1338 = vld [vmem:[%s1331 + $0x18] sm:$0xf]
        %v1339 = vld [vmem:[%s1331 + $0x1c] sm:$0xf]
        %v1340 = vld [vmem:[%s1331 + $0x20] sm:$0xf]
        %v1341 = vld [vmem:[%s1331 + $0x24] sm:$0xf]
        %v1342 = vld [vmem:[%s1331 + $0x28] sm:$0xf]
        %v1343 = vld [vmem:[%s1331 + $0x2c] sm:$0xf]
        %v1344 = vld [vmem:[%s1331 + $0x30] sm:$0xf]
        %v1345 = vld [vmem:[%s1331 + $0x34] sm:$0xf]
        %v1346 = vld [vmem:[%s1331 + $0x38] sm:$0xf]
        %v1347 = vld [vmem:[%s1331 + $0x3c] sm:$0xf]
        %v1348 = vunpack.c.l.b16 %v1278
        %v1349 = vunpack.c.l.b16 %v1281
        %v1350 = vunpack.c.l.b16 %v1285
        %v1351 = vunpack.c.l.b16 %v1288
        %v1352 = vunpack.c.l.b16 %v1292
        %v1353 = vunpack.c.l.b16 %v1295
        %v1354 = vunpack.c.l.b16 %v1299
        %v1355 = vunpack.c.l.b16 %v1302
        %v1356 = vunpack.c.l.b16 %v1306
        %v1357 = vunpack.c.l.b16 %v1309
        %v1358 = vunpack.c.l.b16 %v1313
        %v1359 = vunpack.c.l.b16 %v1316
        %v1360 = vunpack.c.l.b16 %v1320
        %v1361 = vunpack.c.l.b16 %v1323
        %v1362 = vunpack.c.l.b16 %v1327
        %v1363 = vunpack.c.l.b16 %v1330
        %v1364 = vpack.c.b16 %v1349, %v1348
        %v1365 = vpack.c.b16 %v1351, %v1350
        %v1366 = vpack.c.b16 %v1353, %v1352
        %v1367 = vpack.c.b16 %v1355, %v1354
        %v1368 = vpack.c.b16 %v1357, %v1356
        %v1369 = vpack.c.b16 %v1359, %v1358
        %v1370 = vpack.c.b16 %v1361, %v1360
        %v1371 = vpack.c.b16 %v1363, %v1362
        %v1396 = vunpack.c.l.b16 %v1332
        %v1397 = vunpack.c.l.b16 %v1333
        %v1398 = vunpack.c.l.b16 %v1334
        %v1399 = vunpack.c.l.b16 %v1335
        %v1400 = vunpack.c.l.b16 %v1336
        %v1401 = vunpack.c.l.b16 %v1337
        %v1402 = vunpack.c.l.b16 %v1338
        %v1403 = vunpack.c.l.b16 %v1339
        %v1404 = vunpack.c.l.b16 %v1340
        %v1405 = vunpack.c.l.b16 %v1341
        %v1406 = vunpack.c.l.b16 %v1342
        %v1407 = vunpack.c.l.b16 %v1343
        %v1408 = vunpack.c.l.b16 %v1344
        %v1409 = vunpack.c.l.b16 %v1345
        %v1410 = vunpack.c.l.b16 %v1346
        %v1411 = vunpack.c.l.b16 %v1347
        %v1412 = vpack.c.b16 %v1397, %v1396
        %v1413 = vpack.c.b16 %v1399, %v1398
        %v1414 = vpack.c.b16 %v1401, %v1400
        %v1415 = vpack.c.b16 %v1403, %v1402
        %v1416 = vpack.c.b16 %v1405, %v1404
        %v1417 = vpack.c.b16 %v1407, %v1406
        %v1418 = vpack.c.b16 %v1409, %v1408
        %v1419 = vpack.c.b16 %v1411, %v1410
        %1428 = vmatprep.subr.bf16.mxu0 0
        %1429 = vmatpush1.bf16.msra.mxu0 %v1419
        %1430 = vmatprep.subr.bf16.mxu0 0
        %1431 = vmatpush1.bf16.msra.mxu0 %v1418
        %1432 = vmatprep.subr.bf16.mxu0 0
        %1433 = vmatpush1.bf16.msra.mxu0 %v1417
        %1434 = vmatprep.subr.bf16.mxu0 0
        %1435 = vmatpush1.bf16.msra.mxu0 %v1416
        %1436 = vmatprep.subr.bf16.mxu0 0
        %1437 = vmatpush1.bf16.msra.mxu0 %v1415
        %1438 = vmatprep.subr.bf16.mxu0 0
        %1439 = vmatpush1.bf16.msra.mxu0 %v1414
        %1440 = vmatprep.subr.bf16.mxu0 0
        %1441 = vmatpush1.bf16.msra.mxu0 %v1413
        %1442 = vmatprep.subr.bf16.mxu0 0
        %1443 = vmatpush1.bf16.msra.mxu0 %v1412
        %1444 = vmatprep.subr.bf16.mxu0 0
        %1445 = vmatpush2.bf16.msra.mxu0 0
        %1446 = vmatprep.subr.bf16.mxu0 0
        %1447 = vmatpush2.bf16.msra.mxu0 0
        %1448 = vmatprep.subr.bf16.mxu0 0
        %1449 = vmatpush2.bf16.msra.mxu0 0
        %1450 = vmatprep.subr.bf16.mxu0 0
        %1451 = vmatpush2.bf16.msra.mxu0 0
        %1452 = vmatprep.subr.bf16.mxu0 0
        %1453 = vmatpush2.bf16.msra.mxu0 0
        %1454 = vmatprep.subr.bf16.mxu0 0
        %1455 = vmatpush2.bf16.msra.mxu0 0
        %1456 = vmatprep.subr.bf16.mxu0 0
        %1457 = vmatpush2.bf16.msra.mxu0 0
        %1458 = vmatprep.subr.bf16.mxu0 0
        %1459 = vmatpush2.bf16.msra.mxu0 0
        %1460 = vmatprep.mubr.bf16.mxu0 0
        %1461 = vmatmul.mubr.bf16.gmra.mxu0 %v1364
        %v1462 = vpop.f32.mrf.mxu0
        %v1463 = vadd.f32 0.0, %v1462
        %v1464 = vpop.f32.mrf.mxu0
        %v1465 = vpop.f32.mrf.mxu0
        %v1466 = vadd.f32 0.0, %v1465
        %v1467 = vpop.f32.mrf.mxu0
        %1468 = vmatprep.mubr.bf16.mxu0 0
        %1469 = vmatmul.mubr.bf16.gmra.mxu0 %v1365
        %v1470 = vpop.f32.mrf.mxu0
        %v1471 = vadd.f32 0.0, %v1470
        %v1472 = vpop.f32.mrf.mxu0
        %v1473 = vpop.f32.mrf.mxu0
        %v1474 = vadd.f32 0.0, %v1473
        %v1475 = vpop.f32.mrf.mxu0
        %1476 = vmatprep.mubr.bf16.mxu0 0
        %1477 = vmatmul.mubr.bf16.gmra.mxu0 %v1366
        %v1478 = vpop.f32.mrf.mxu0
        %v1479 = vadd.f32 0.0, %v1478
        %v1480 = vpop.f32.mrf.mxu0
        %v1481 = vpop.f32.mrf.mxu0
        %v1482 = vadd.f32 0.0, %v1481
        %v1483 = vpop.f32.mrf.mxu0
        %1484 = vmatprep.mubr.bf16.mxu0 0
        %1485 = vmatmul.mubr.bf16.gmra.mxu0 %v1367
        %v1486 = vpop.f32.mrf.mxu0
        %v1487 = vadd.f32 0.0, %v1486
        %v1488 = vpop.f32.mrf.mxu0
        %v1489 = vpop.f32.mrf.mxu0
        %v1490 = vadd.f32 0.0, %v1489
        %v1491 = vpop.f32.mrf.mxu0
        %1492 = vmatprep.mubr.bf16.mxu0 0
        %1493 = vmatmul.mubr.bf16.gmra.mxu0 %v1368
        %v1494 = vpop.f32.mrf.mxu0
        %v1495 = vadd.f32 0.0, %v1494
        %v1496 = vpop.f32.mrf.mxu0
        %v1497 = vpop.f32.mrf.mxu0
        %v1498 = vadd.f32 0.0, %v1497
        %v1499 = vpop.f32.mrf.mxu0
        %1500 = vmatprep.mubr.bf16.mxu0 0
        %1501 = vmatmul.mubr.bf16.gmra.mxu0 %v1369
        %v1502 = vpop.f32.mrf.mxu0
        %v1503 = vadd.f32 0.0, %v1502
        %v1504 = vpop.f32.mrf.mxu0
        %v1505 = vpop.f32.mrf.mxu0
        %v1506 = vadd.f32 0.0, %v1505
        %v1507 = vpop.f32.mrf.mxu0
        %1508 = vmatprep.mubr.bf16.mxu0 0
        %1509 = vmatmul.mubr.bf16.gmra.mxu0 %v1370
        %v1510 = vpop.f32.mrf.mxu0
        %v1511 = vadd.f32 0.0, %v1510
        %v1512 = vpop.f32.mrf.mxu0
        %v1513 = vpop.f32.mrf.mxu0
        %v1514 = vadd.f32 0.0, %v1513
        %v1515 = vpop.f32.mrf.mxu0
        %1516 = vmatprep.mubr.bf16.mxu0 0
        %1517 = vmatmul.mubr.bf16.gmra.mxu0 %v1371
        %v1518 = vpop.f32.mrf.mxu0
        %v1519 = vadd.f32 0.0, %v1518
        %v1520 = vpop.f32.mrf.mxu0
        %v1521 = vpop.f32.mrf.mxu0
        %v1522 = vadd.f32 0.0, %v1521
        %v1523 = vpop.f32.mrf.mxu0
        %1524 = vdwg.mxu0
        %v1525 = vadd.f32 %v1210, %v1463
        %v1526 = vadd.f32 %v1213, %v1466
        %v1527 = vadd.f32 %v1218, %v1471
        %v1528 = vadd.f32 %v1221, %v1474
        %v1529 = vadd.f32 %v1226, %v1479
        %v1530 = vadd.f32 %v1229, %v1482
        %v1531 = vadd.f32 %v1234, %v1487
        %v1532 = vadd.f32 %v1237, %v1490
        %v1533 = vadd.f32 %v1242, %v1495
        %v1534 = vadd.f32 %v1245, %v1498
        %v1535 = vadd.f32 %v1250, %v1503
        %v1536 = vadd.f32 %v1253, %v1506
        %v1537 = vadd.f32 %v1258, %v1511
        %v1538 = vadd.f32 %v1261, %v1514
        %v1539 = vadd.f32 %v1266, %v1519
        %v1540 = vadd.f32 %v1269, %v1522
        %vm1541 = vsmask.f32 2304
        %vm1542 = vsmask.f32 6416
        %vm1543 = vmor %vm1541, %vm1542
        %v1544 = vrot.slane %v726, 5
        %v1545 = vrot.slane %v729, 6
        %v1546 = vor.u32 %v1544, %v1545
        %v1547 = vrot.slane %v1546, 4
        %v1548 = vrot.slane %v739, 5
        %v1549 = vrot.slane %v735, 6
        %v1550 = vor.u32 %v1548, %v1549
        %v1551 = vsel %vm1543, %v1547, %v1550
        %v1552 = vrot.slane %v1550, 4
        %v1553 = vshrl.u32 %v682, 16
        %v1555 = vrot.slane %v1553, 5
        %v1556 = vrot.slane %v745, 6
        %v1557 = vor.u32 %v1555, %v1556
        %v1558 = vsel %vm1543, %v1552, %v1557
        %v1559 = vrot.slane %v750, 5
        %v1560 = vrot.slane %v753, 6
        %v1561 = vor.u32 %v1559, %v1560
        %v1562 = vrot.slane %v1561, 4
        %v1563 = vrot.slane %v763, 5
        %v1564 = vrot.slane %v759, 6
        %v1565 = vor.u32 %v1563, %v1564
        %v1566 = vsel %vm1543, %v1562, %v1565
        %v1567 = vrot.slane %v1565, 4
        %v1568 = vshrl.u32 %v685, 16
        %v1570 = vrot.slane %v1568, 5
        %v1571 = vrot.slane %v769, 6
        %v1572 = vor.u32 %v1570, %v1571
        %v1573 = vsel %vm1543, %v1567, %v1572
        %v1574 = vrot.slane %v774, 5
        %v1575 = vrot.slane %v777, 6
        %v1576 = vor.u32 %v1574, %v1575
        %v1577 = vrot.slane %v1576, 4
        %v1578 = vrot.slane %v787, 5
        %v1579 = vrot.slane %v783, 6
        %v1580 = vor.u32 %v1578, %v1579
        %v1581 = vsel %vm1543, %v1577, %v1580
        %v1582 = vrot.slane %v1580, 4
        %v1583 = vshrl.u32 %v688, 16
        %v1585 = vrot.slane %v1583, 5
        %v1586 = vrot.slane %v793, 6
        %v1587 = vor.u32 %v1585, %v1586
        %v1588 = vsel %vm1543, %v1582, %v1587
        %v1589 = vrot.slane %v798, 5
        %v1590 = vrot.slane %v801, 6
        %v1591 = vor.u32 %v1589, %v1590
        %v1592 = vrot.slane %v1591, 4
        %v1593 = vrot.slane %v811, 5
        %v1594 = vrot.slane %v807, 6
        %v1595 = vor.u32 %v1593, %v1594
        %v1596 = vsel %vm1543, %v1592, %v1595
        %v1597 = vrot.slane %v1595, 4
        %v1598 = vshrl.u32 %v691, 16
        %v1600 = vrot.slane %v1598, 5
        %v1601 = vrot.slane %v817, 6
        %v1602 = vor.u32 %v1600, %v1601
        %v1603 = vsel %vm1543, %v1597, %v1602
        %v1604 = vrot.slane %v822, 5
        %v1605 = vrot.slane %v825, 6
        %v1606 = vor.u32 %v1604, %v1605
        %v1607 = vrot.slane %v1606, 4
        %v1608 = vrot.slane %v835, 5
        %v1609 = vrot.slane %v831, 6
        %v1610 = vor.u32 %v1608, %v1609
        %v1611 = vsel %vm1543, %v1607, %v1610
        %v1612 = vrot.slane %v1610, 4
        %v1613 = vshrl.u32 %v694, 16
        %v1615 = vrot.slane %v1613, 5
        %v1616 = vrot.slane %v841, 6
        %v1617 = vor.u32 %v1615, %v1616
        %v1618 = vsel %vm1543, %v1612, %v1617
        %v1619 = vrot.slane %v846, 5
        %v1620 = vrot.slane %v849, 6
        %v1621 = vor.u32 %v1619, %v1620
        %v1622 = vrot.slane %v1621, 4
        %v1623 = vrot.slane %v859, 5
        %v1624 = vrot.slane %v855, 6
        %v1625 = vor.u32 %v1623, %v1624
        %v1626 = vsel %vm1543, %v1622, %v1625
        %v1627 = vrot.slane %v1625, 4
        %v1628 = vshrl.u32 %v697, 16
        %v1630 = vrot.slane %v1628, 5
        %v1631 = vrot.slane %v865, 6
        %v1632 = vor.u32 %v1630, %v1631
        %v1633 = vsel %vm1543, %v1627, %v1632
        %v1634 = vrot.slane %v870, 5
        %v1635 = vrot.slane %v873, 6
        %v1636 = vor.u32 %v1634, %v1635
        %v1637 = vrot.slane %v1636, 4
        %v1638 = vrot.slane %v883, 5
        %v1639 = vrot.slane %v879, 6
        %v1640 = vor.u32 %v1638, %v1639
        %v1641 = vsel %vm1543, %v1637, %v1640
        %v1642 = vrot.slane %v1640, 4
        %v1643 = vshrl.u32 %v700, 16
        %v1645 = vrot.slane %v1643, 5
        %v1646 = vrot.slane %v889, 6
        %v1647 = vor.u32 %v1645, %v1646
        %v1648 = vsel %vm1543, %v1642, %v1647
        %v1649 = vrot.slane %v894, 5
        %v1650 = vrot.slane %v897, 6
        %v1651 = vor.u32 %v1649, %v1650
        %v1652 = vrot.slane %v1651, 4
        %v1653 = vrot.slane %v907, 5
        %v1654 = vrot.slane %v903, 6
        %v1655 = vor.u32 %v1653, %v1654
        %v1656 = vsel %vm1543, %v1652, %v1655
        %v1657 = vrot.slane %v1655, 4
        %v1658 = vshrl.u32 %v703, 16
        %v1660 = vrot.slane %v1658, 5
        %v1661 = vrot.slane %v913, 6
        %v1662 = vor.u32 %v1660, %v1661
        %v1663 = vsel %vm1543, %v1657, %v1662
        %s1664 = scalar_lea.vmem %s2, 192
        %v1665 = vld [vmem:[%s1664] sm:$0xf]
        %v1666 = vld [vmem:[%s1664 + $0x4] sm:$0xf]
        %v1667 = vld [vmem:[%s1664 + $0x8] sm:$0xf]
        %v1668 = vld [vmem:[%s1664 + $0xc] sm:$0xf]
        %v1669 = vld [vmem:[%s1664 + $0x10] sm:$0xf]
        %v1670 = vld [vmem:[%s1664 + $0x14] sm:$0xf]
        %v1671 = vld [vmem:[%s1664 + $0x18] sm:$0xf]
        %v1672 = vld [vmem:[%s1664 + $0x1c] sm:$0xf]
        %v1673 = vld [vmem:[%s1664 + $0x20] sm:$0xf]
        %v1674 = vld [vmem:[%s1664 + $0x24] sm:$0xf]
        %v1675 = vld [vmem:[%s1664 + $0x28] sm:$0xf]
        %v1676 = vld [vmem:[%s1664 + $0x2c] sm:$0xf]
        %v1677 = vld [vmem:[%s1664 + $0x30] sm:$0xf]
        %v1678 = vld [vmem:[%s1664 + $0x34] sm:$0xf]
        %v1679 = vld [vmem:[%s1664 + $0x38] sm:$0xf]
        %v1680 = vld [vmem:[%s1664 + $0x3c] sm:$0xf]
        %v1681 = vunpack.c.l.b16 %v1551
        %v1682 = vunpack.c.l.b16 %v1558
        %v1683 = vunpack.c.l.b16 %v1566
        %v1684 = vunpack.c.l.b16 %v1573
        %v1685 = vunpack.c.l.b16 %v1581
        %v1686 = vunpack.c.l.b16 %v1588
        %v1687 = vunpack.c.l.b16 %v1596
        %v1688 = vunpack.c.l.b16 %v1603
        %v1689 = vunpack.c.l.b16 %v1611
        %v1690 = vunpack.c.l.b16 %v1618
        %v1691 = vunpack.c.l.b16 %v1626
        %v1692 = vunpack.c.l.b16 %v1633
        %v1693 = vunpack.c.l.b16 %v1641
        %v1694 = vunpack.c.l.b16 %v1648
        %v1695 = vunpack.c.l.b16 %v1656
        %v1696 = vunpack.c.l.b16 %v1663
        %v1697 = vpack.c.b16 %v1682, %v1681
        %v1698 = vpack.c.b16 %v1684, %v1683
        %v1699 = vpack.c.b16 %v1686, %v1685
        %v1700 = vpack.c.b16 %v1688, %v1687
        %v1701 = vpack.c.b16 %v1690, %v1689
        %v1702 = vpack.c.b16 %v1692, %v1691
        %v1703 = vpack.c.b16 %v1694, %v1693
        %v1704 = vpack.c.b16 %v1696, %v1695
        %v1729 = vunpack.c.l.b16 %v1665
        %v1730 = vunpack.c.l.b16 %v1666
        %v1731 = vunpack.c.l.b16 %v1667
        %v1732 = vunpack.c.l.b16 %v1668
        %v1733 = vunpack.c.l.b16 %v1669
        %v1734 = vunpack.c.l.b16 %v1670
        %v1735 = vunpack.c.l.b16 %v1671
        %v1736 = vunpack.c.l.b16 %v1672
        %v1737 = vunpack.c.l.b16 %v1673
        %v1738 = vunpack.c.l.b16 %v1674
        %v1739 = vunpack.c.l.b16 %v1675
        %v1740 = vunpack.c.l.b16 %v1676
        %v1741 = vunpack.c.l.b16 %v1677
        %v1742 = vunpack.c.l.b16 %v1678
        %v1743 = vunpack.c.l.b16 %v1679
        %v1744 = vunpack.c.l.b16 %v1680
        %v1745 = vpack.c.b16 %v1730, %v1729
        %v1746 = vpack.c.b16 %v1732, %v1731
        %v1747 = vpack.c.b16 %v1734, %v1733
        %v1748 = vpack.c.b16 %v1736, %v1735
        %v1749 = vpack.c.b16 %v1738, %v1737
        %v1750 = vpack.c.b16 %v1740, %v1739
        %v1751 = vpack.c.b16 %v1742, %v1741
        %v1752 = vpack.c.b16 %v1744, %v1743
        %1761 = vmatprep.subr.bf16.mxu0 0
        %1762 = vmatpush1.bf16.msra.mxu0 %v1752
        %1763 = vmatprep.subr.bf16.mxu0 0
        %1764 = vmatpush1.bf16.msra.mxu0 %v1751
        %1765 = vmatprep.subr.bf16.mxu0 0
        %1766 = vmatpush1.bf16.msra.mxu0 %v1750
        %1767 = vmatprep.subr.bf16.mxu0 0
        %1768 = vmatpush1.bf16.msra.mxu0 %v1749
        %1769 = vmatprep.subr.bf16.mxu0 0
        %1770 = vmatpush1.bf16.msra.mxu0 %v1748
        %1771 = vmatprep.subr.bf16.mxu0 0
        %1772 = vmatpush1.bf16.msra.mxu0 %v1747
        %1773 = vmatprep.subr.bf16.mxu0 0
        %1774 = vmatpush1.bf16.msra.mxu0 %v1746
        %1775 = vmatprep.subr.bf16.mxu0 0
        %1776 = vmatpush1.bf16.msra.mxu0 %v1745
        %1777 = vmatprep.subr.bf16.mxu0 0
        %1778 = vmatpush2.bf16.msra.mxu0 0
        %1779 = vmatprep.subr.bf16.mxu0 0
        %1780 = vmatpush2.bf16.msra.mxu0 0
        %1781 = vmatprep.subr.bf16.mxu0 0
        %1782 = vmatpush2.bf16.msra.mxu0 0
        %1783 = vmatprep.subr.bf16.mxu0 0
        %1784 = vmatpush2.bf16.msra.mxu0 0
        %1785 = vmatprep.subr.bf16.mxu0 0
        %1786 = vmatpush2.bf16.msra.mxu0 0
        %1787 = vmatprep.subr.bf16.mxu0 0
        %1788 = vmatpush2.bf16.msra.mxu0 0
        %1789 = vmatprep.subr.bf16.mxu0 0
        %1790 = vmatpush2.bf16.msra.mxu0 0
        %1791 = vmatprep.subr.bf16.mxu0 0
        %1792 = vmatpush2.bf16.msra.mxu0 0
        %1793 = vmatprep.mubr.bf16.mxu0 0
        %1794 = vmatmul.mubr.bf16.gmra.mxu0 %v1697
        %v1795 = vpop.f32.mrf.mxu0
        %v1796 = vadd.f32 0.0, %v1795
        %v1797 = vpop.f32.mrf.mxu0
        %v1798 = vpop.f32.mrf.mxu0
        %v1799 = vadd.f32 0.0, %v1798
        %v1800 = vpop.f32.mrf.mxu0
        %1801 = vmatprep.mubr.bf16.mxu0 0
        %1802 = vmatmul.mubr.bf16.gmra.mxu0 %v1698
        %v1803 = vpop.f32.mrf.mxu0
        %v1804 = vadd.f32 0.0, %v1803
        %v1805 = vpop.f32.mrf.mxu0
        %v1806 = vpop.f32.mrf.mxu0
        %v1807 = vadd.f32 0.0, %v1806
        %v1808 = vpop.f32.mrf.mxu0
        %1809 = vmatprep.mubr.bf16.mxu0 0
        %1810 = vmatmul.mubr.bf16.gmra.mxu0 %v1699
        %v1811 = vpop.f32.mrf.mxu0
        %v1812 = vadd.f32 0.0, %v1811
        %v1813 = vpop.f32.mrf.mxu0
        %v1814 = vpop.f32.mrf.mxu0
        %v1815 = vadd.f32 0.0, %v1814
        %v1816 = vpop.f32.mrf.mxu0
        %1817 = vmatprep.mubr.bf16.mxu0 0
        %1818 = vmatmul.mubr.bf16.gmra.mxu0 %v1700
        %v1819 = vpop.f32.mrf.mxu0
        %v1820 = vadd.f32 0.0, %v1819
        %v1821 = vpop.f32.mrf.mxu0
        %v1822 = vpop.f32.mrf.mxu0
        %v1823 = vadd.f32 0.0, %v1822
        %v1824 = vpop.f32.mrf.mxu0
        %1825 = vmatprep.mubr.bf16.mxu0 0
        %1826 = vmatmul.mubr.bf16.gmra.mxu0 %v1701
        %v1827 = vpop.f32.mrf.mxu0
        %v1828 = vadd.f32 0.0, %v1827
        %v1829 = vpop.f32.mrf.mxu0
        %v1830 = vpop.f32.mrf.mxu0
        %v1831 = vadd.f32 0.0, %v1830
        %v1832 = vpop.f32.mrf.mxu0
        %1833 = vmatprep.mubr.bf16.mxu0 0
        %1834 = vmatmul.mubr.bf16.gmra.mxu0 %v1702
        %v1835 = vpop.f32.mrf.mxu0
        %v1836 = vadd.f32 0.0, %v1835
        %v1837 = vpop.f32.mrf.mxu0
        %v1838 = vpop.f32.mrf.mxu0
        %v1839 = vadd.f32 0.0, %v1838
        %v1840 = vpop.f32.mrf.mxu0
        %1841 = vmatprep.mubr.bf16.mxu0 0
        %1842 = vmatmul.mubr.bf16.gmra.mxu0 %v1703
        %v1843 = vpop.f32.mrf.mxu0
        %v1844 = vadd.f32 0.0, %v1843
        %v1845 = vpop.f32.mrf.mxu0
        %v1846 = vpop.f32.mrf.mxu0
        %v1847 = vadd.f32 0.0, %v1846
        %v1848 = vpop.f32.mrf.mxu0
        %1849 = vmatprep.mubr.bf16.mxu0 0
        %1850 = vmatmul.mubr.bf16.gmra.mxu0 %v1704
        %v1851 = vpop.f32.mrf.mxu0
        %v1852 = vadd.f32 0.0, %v1851
        %v1853 = vpop.f32.mrf.mxu0
        %v1854 = vpop.f32.mrf.mxu0
        %v1855 = vadd.f32 0.0, %v1854
        %v1856 = vpop.f32.mrf.mxu0
        %1857 = vdwg.mxu0
        %v1858 = vadd.f32 %v1525, %v1796
        %v1859 = vadd.f32 %v1526, %v1799
        %v1860 = vadd.f32 %v1527, %v1804
        %v1861 = vadd.f32 %v1528, %v1807
        %v1862 = vadd.f32 %v1529, %v1812
        %v1863 = vadd.f32 %v1530, %v1815
        %v1864 = vadd.f32 %v1531, %v1820
        %v1865 = vadd.f32 %v1532, %v1823
        %v1866 = vadd.f32 %v1533, %v1828
        %v1867 = vadd.f32 %v1534, %v1831
        %v1868 = vadd.f32 %v1535, %v1836
        %v1869 = vadd.f32 %v1536, %v1839
        %v1870 = vadd.f32 %v1537, %v1844
        %v1871 = vadd.f32 %v1538, %v1847
        %v1872 = vadd.f32 %v1539, %v1852
        %v1873 = vadd.f32 %v1540, %v1855
        %vm1874 = vcmask 1041408
        %vm1875 = vcmask 1045508
        %vm1876 = vmor %vm1874, %vm1875
        %v1877 = vrot.slane %v680, 6
        %v1878 = vrot.slane %v1877, 4
        %v1879 = vrot.slane %v681, 6
        %v1880 = vsel %vm1876, %v1878, %v1879
        %v1881 = vrot.slane %v1879, 4
        %v1882 = vrot.slane %v682, 6
        %v1883 = vsel %vm1876, %v1881, %v1882
        %v1884 = vrot.slane %v683, 6
        %v1885 = vrot.slane %v1884, 4
        %v1886 = vrot.slane %v684, 6
        %v1887 = vsel %vm1876, %v1885, %v1886
        %v1888 = vrot.slane %v1886, 4
        %v1889 = vrot.slane %v685, 6
        %v1890 = vsel %vm1876, %v1888, %v1889
        %v1891 = vrot.slane %v686, 6
        %v1892 = vrot.slane %v1891, 4
        %v1893 = vrot.slane %v687, 6
        %v1894 = vsel %vm1876, %v1892, %v1893
        %v1895 = vrot.slane %v1893, 4
        %v1896 = vrot.slane %v688, 6
        %v1897 = vsel %vm1876, %v1895, %v1896
        %v1898 = vrot.slane %v689, 6
        %v1899 = vrot.slane %v1898, 4
        %v1900 = vrot.slane %v690, 6
        %v1901 = vsel %vm1876, %v1899, %v1900
        %v1902 = vrot.slane %v1900, 4
        %v1903 = vrot.slane %v691, 6
        %v1904 = vsel %vm1876, %v1902, %v1903
        %v1905 = vrot.slane %v692, 6
        %v1906 = vrot.slane %v1905, 4
        %v1907 = vrot.slane %v693, 6
        %v1908 = vsel %vm1876, %v1906, %v1907
        %v1909 = vrot.slane %v1907, 4
        %v1910 = vrot.slane %v694, 6
        %v1911 = vsel %vm1876, %v1909, %v1910
        %v1912 = vrot.slane %v695, 6
        %v1913 = vrot.slane %v1912, 4
        %v1914 = vrot.slane %v696, 6
        %v1915 = vsel %vm1876, %v1913, %v1914
        %v1916 = vrot.slane %v1914, 4
        %v1917 = vrot.slane %v697, 6
        %v1918 = vsel %vm1876, %v1916, %v1917
        %v1919 = vrot.slane %v698, 6
        %v1920 = vrot.slane %v1919, 4
        %v1921 = vrot.slane %v699, 6
        %v1922 = vsel %vm1876, %v1920, %v1921
        %v1923 = vrot.slane %v1921, 4
        %v1924 = vrot.slane %v700, 6
        %v1925 = vsel %vm1876, %v1923, %v1924
        %v1926 = vrot.slane %v701, 6
        %v1927 = vrot.slane %v1926, 4
        %v1928 = vrot.slane %v702, 6
        %v1929 = vsel %vm1876, %v1927, %v1928
        %v1930 = vrot.slane %v1928, 4
        %v1931 = vrot.slane %v703, 6
        %v1932 = vsel %vm1876, %v1930, %v1931
        %s1933 = scalar_lea.vmem %s2, 256
        %v1934 = vld [vmem:[%s1933] sm:$0xf]
        %v1935 = vld [vmem:[%s1933 + $0x4] sm:$0xf]
        %v1936 = vld [vmem:[%s1933 + $0x8] sm:$0xf]
        %v1937 = vld [vmem:[%s1933 + $0xc] sm:$0xf]
        %v1938 = vld [vmem:[%s1933 + $0x10] sm:$0xf]
        %v1939 = vld [vmem:[%s1933 + $0x14] sm:$0xf]
        %v1940 = vld [vmem:[%s1933 + $0x18] sm:$0xf]
        %v1941 = vld [vmem:[%s1933 + $0x1c] sm:$0xf]
        %v1942 = vld [vmem:[%s1933 + $0x20] sm:$0xf]
        %v1943 = vld [vmem:[%s1933 + $0x24] sm:$0xf]
        %v1944 = vld [vmem:[%s1933 + $0x28] sm:$0xf]
        %v1945 = vld [vmem:[%s1933 + $0x2c] sm:$0xf]
        %v1946 = vld [vmem:[%s1933 + $0x30] sm:$0xf]
        %v1947 = vld [vmem:[%s1933 + $0x34] sm:$0xf]
        %v1948 = vld [vmem:[%s1933 + $0x38] sm:$0xf]
        %v1949 = vld [vmem:[%s1933 + $0x3c] sm:$0xf]
        %v1950 = vunpack.c.l.b16 %v1880
        %v1951 = vunpack.c.l.b16 %v1883
        %v1952 = vunpack.c.l.b16 %v1887
        %v1953 = vunpack.c.l.b16 %v1890
        %v1954 = vunpack.c.l.b16 %v1894
        %v1955 = vunpack.c.l.b16 %v1897
        %v1956 = vunpack.c.l.b16 %v1901
        %v1957 = vunpack.c.l.b16 %v1904
        %v1958 = vunpack.c.l.b16 %v1908
        %v1959 = vunpack.c.l.b16 %v1911
        %v1960 = vunpack.c.l.b16 %v1915
        %v1961 = vunpack.c.l.b16 %v1918
        %v1962 = vunpack.c.l.b16 %v1922
        %v1963 = vunpack.c.l.b16 %v1925
        %v1964 = vunpack.c.l.b16 %v1929
        %v1965 = vunpack.c.l.b16 %v1932
        %v1966 = vpack.c.b16 %v1951, %v1950
        %v1967 = vpack.c.b16 %v1953, %v1952
        %v1968 = vpack.c.b16 %v1955, %v1954
        %v1969 = vpack.c.b16 %v1957, %v1956
        %v1970 = vpack.c.b16 %v1959, %v1958
        %v1971 = vpack.c.b16 %v1961, %v1960
        %v1972 = vpack.c.b16 %v1963, %v1962
        %v1973 = vpack.c.b16 %v1965, %v1964
        %v1998 = vunpack.c.l.b16 %v1934
        %v1999 = vunpack.c.l.b16 %v1935
        %v2000 = vunpack.c.l.b16 %v1936
        %v2001 = vunpack.c.l.b16 %v1937
        %v2002 = vunpack.c.l.b16 %v1938
        %v2003 = vunpack.c.l.b16 %v1939
        %v2004 = vunpack.c.l.b16 %v1940
        %v2005 = vunpack.c.l.b16 %v1941
        %v2006 = vunpack.c.l.b16 %v1942
        %v2007 = vunpack.c.l.b16 %v1943
        %v2008 = vunpack.c.l.b16 %v1944
        %v2009 = vunpack.c.l.b16 %v1945
        %v2010 = vunpack.c.l.b16 %v1946
        %v2011 = vunpack.c.l.b16 %v1947
        %v2012 = vunpack.c.l.b16 %v1948
        %v2013 = vunpack.c.l.b16 %v1949
        %v2014 = vpack.c.b16 %v1999, %v1998
        %v2015 = vpack.c.b16 %v2001, %v2000
        %v2016 = vpack.c.b16 %v2003, %v2002
        %v2017 = vpack.c.b16 %v2005, %v2004
        %v2018 = vpack.c.b16 %v2007, %v2006
        %v2019 = vpack.c.b16 %v2009, %v2008
        %v2020 = vpack.c.b16 %v2011, %v2010
        %v2021 = vpack.c.b16 %v2013, %v2012
        %2030 = vmatprep.subr.bf16.mxu0 0
        %2031 = vmatpush1.bf16.msra.mxu0 %v2021
        %2032 = vmatprep.subr.bf16.mxu0 0
        %2033 = vmatpush1.bf16.msra.mxu0 %v2020
        %2034 = vmatprep.subr.bf16.mxu0 0
        %2035 = vmatpush1.bf16.msra.mxu0 %v2019
        %2036 = vmatprep.subr.bf16.mxu0 0
        %2037 = vmatpush1.bf16.msra.mxu0 %v2018
        %2038 = vmatprep.subr.bf16.mxu0 0
        %2039 = vmatpush1.bf16.msra.mxu0 %v2017
        %2040 = vmatprep.subr.bf16.mxu0 0
        %2041 = vmatpush1.bf16.msra.mxu0 %v2016
        %2042 = vmatprep.subr.bf16.mxu0 0
        %2043 = vmatpush1.bf16.msra.mxu0 %v2015
        %2044 = vmatprep.subr.bf16.mxu0 0
        %2045 = vmatpush1.bf16.msra.mxu0 %v2014
        %2046 = vmatprep.subr.bf16.mxu0 0
        %2047 = vmatpush2.bf16.msra.mxu0 0
        %2048 = vmatprep.subr.bf16.mxu0 0
        %2049 = vmatpush2.bf16.msra.mxu0 0
        %2050 = vmatprep.subr.bf16.mxu0 0
        %2051 = vmatpush2.bf16.msra.mxu0 0
        %2052 = vmatprep.subr.bf16.mxu0 0
        %2053 = vmatpush2.bf16.msra.mxu0 0
        %2054 = vmatprep.subr.bf16.mxu0 0
        %2055 = vmatpush2.bf16.msra.mxu0 0
        %2056 = vmatprep.subr.bf16.mxu0 0
        %2057 = vmatpush2.bf16.msra.mxu0 0
        %2058 = vmatprep.subr.bf16.mxu0 0
        %2059 = vmatpush2.bf16.msra.mxu0 0
        %2060 = vmatprep.subr.bf16.mxu0 0
        %2061 = vmatpush2.bf16.msra.mxu0 0
        %2062 = vmatprep.mubr.bf16.mxu0 0
        %2063 = vmatmul.mubr.bf16.gmra.mxu0 %v1966
        %v2064 = vpop.f32.mrf.mxu0
        %v2065 = vadd.f32 0.0, %v2064
        %v2066 = vpop.f32.mrf.mxu0
        %v2067 = vpop.f32.mrf.mxu0
        %v2068 = vadd.f32 0.0, %v2067
        %v2069 = vpop.f32.mrf.mxu0
        %2070 = vmatprep.mubr.bf16.mxu0 0
        %2071 = vmatmul.mubr.bf16.gmra.mxu0 %v1967
        %v2072 = vpop.f32.mrf.mxu0
        %v2073 = vadd.f32 0.0, %v2072
        %v2074 = vpop.f32.mrf.mxu0
        %v2075 = vpop.f32.mrf.mxu0
        %v2076 = vadd.f32 0.0, %v2075
        %v2077 = vpop.f32.mrf.mxu0
        %2078 = vmatprep.mubr.bf16.mxu0 0
        %2079 = vmatmul.mubr.bf16.gmra.mxu0 %v1968
        %v2080 = vpop.f32.mrf.mxu0
        %v2081 = vadd.f32 0.0, %v2080
        %v2082 = vpop.f32.mrf.mxu0
        %v2083 = vpop.f32.mrf.mxu0
        %v2084 = vadd.f32 0.0, %v2083
        %v2085 = vpop.f32.mrf.mxu0
        %2086 = vmatprep.mubr.bf16.mxu0 0
        %2087 = vmatmul.mubr.bf16.gmra.mxu0 %v1969
        %v2088 = vpop.f32.mrf.mxu0
        %v2089 = vadd.f32 0.0, %v2088
        %v2090 = vpop.f32.mrf.mxu0
        %v2091 = vpop.f32.mrf.mxu0
        %v2092 = vadd.f32 0.0, %v2091
        %v2093 = vpop.f32.mrf.mxu0
        %2094 = vmatprep.mubr.bf16.mxu0 0
        %2095 = vmatmul.mubr.bf16.gmra.mxu0 %v1970
        %v2096 = vpop.f32.mrf.mxu0
        %v2097 = vadd.f32 0.0, %v2096
        %v2098 = vpop.f32.mrf.mxu0
        %v2099 = vpop.f32.mrf.mxu0
        %v2100 = vadd.f32 0.0, %v2099
        %v2101 = vpop.f32.mrf.mxu0
        %2102 = vmatprep.mubr.bf16.mxu0 0
        %2103 = vmatmul.mubr.bf16.gmra.mxu0 %v1971
        %v2104 = vpop.f32.mrf.mxu0
        %v2105 = vadd.f32 0.0, %v2104
        %v2106 = vpop.f32.mrf.mxu0
        %v2107 = vpop.f32.mrf.mxu0
        %v2108 = vadd.f32 0.0, %v2107
        %v2109 = vpop.f32.mrf.mxu0
        %2110 = vmatprep.mubr.bf16.mxu0 0
        %2111 = vmatmul.mubr.bf16.gmra.mxu0 %v1972
        %v2112 = vpop.f32.mrf.mxu0
        %v2113 = vadd.f32 0.0, %v2112
        %v2114 = vpop.f32.mrf.mxu0
        %v2115 = vpop.f32.mrf.mxu0
        %v2116 = vadd.f32 0.0, %v2115
        %v2117 = vpop.f32.mrf.mxu0
        %2118 = vmatprep.mubr.bf16.mxu0 0
        %2119 = vmatmul.mubr.bf16.gmra.mxu0 %v1973
        %v2120 = vpop.f32.mrf.mxu0
        %v2121 = vadd.f32 0.0, %v2120
        %v2122 = vpop.f32.mrf.mxu0
        %v2123 = vpop.f32.mrf.mxu0
        %v2124 = vadd.f32 0.0, %v2123
        %v2125 = vpop.f32.mrf.mxu0
        %2126 = vdwg.mxu0
        %v2127 = vadd.f32 %v1858, %v2065
        %v2128 = vadd.f32 %v1859, %v2068
        %v2129 = vadd.f32 %v1860, %v2073
        %v2130 = vadd.f32 %v1861, %v2076
        %v2131 = vadd.f32 %v1862, %v2081
        %v2132 = vadd.f32 %v1863, %v2084
        %v2133 = vadd.f32 %v1864, %v2089
        %v2134 = vadd.f32 %v1865, %v2092
        %v2135 = vadd.f32 %v1866, %v2097
        %v2136 = vadd.f32 %v1867, %v2100
        %v2137 = vadd.f32 %v1868, %v2105
        %v2138 = vadd.f32 %v1869, %v2108
        %v2139 = vadd.f32 %v1870, %v2113
        %v2140 = vadd.f32 %v1871, %v2116
        %v2141 = vadd.f32 %v1872, %v2121
        %v2142 = vadd.f32 %v1873, %v2124
        %v2143 = vadd.f32 %v2127, %v704
        %v2144 = vadd.f32 %v2128, %v705
        %v2145 = vadd.f32 %v2129, %v704
        %v2146 = vadd.f32 %v2130, %v705
        %v2147 = vadd.f32 %v2131, %v704
        %v2148 = vadd.f32 %v2132, %v705
        %v2149 = vadd.f32 %v2133, %v704
        %v2150 = vadd.f32 %v2134, %v705
        %v2151 = vadd.f32 %v2135, %v704
        %v2152 = vadd.f32 %v2136, %v705
        %v2153 = vadd.f32 %v2137, %v704
        %v2154 = vadd.f32 %v2138, %v705
        %v2155 = vadd.f32 %v2139, %v704
        %v2156 = vadd.f32 %v2140, %v705
        %v2157 = vadd.f32 %v2141, %v704
        %v2158 = vadd.f32 %v2142, %v705
        %v2159 = vmax.f32 %v2143, 0.0
        %v2160 = vmax.f32 %v2144, 0.0
        %v2161 = vmax.f32 %v2145, 0.0
        %v2162 = vmax.f32 %v2146, 0.0
        %v2163 = vmax.f32 %v2147, 0.0
        %v2164 = vmax.f32 %v2148, 0.0
        %v2165 = vmax.f32 %v2149, 0.0
        %v2166 = vmax.f32 %v2150, 0.0
        %v2167 = vmax.f32 %v2151, 0.0
        %v2168 = vmax.f32 %v2152, 0.0
        %v2169 = vmax.f32 %v2153, 0.0
        %v2170 = vmax.f32 %v2154, 0.0
        %v2171 = vmax.f32 %v2155, 0.0
        %v2172 = vmax.f32 %v2156, 0.0
        %v2173 = vmax.f32 %v2157, 0.0
        %v2174 = vmax.f32 %v2158, 0.0
        %v2175 = vmax.f32 %v2159, %v2160
        %v2176 = vrot.slane %v2175, 4
        %v2177 = vmax.f32 %v2175, %v2176
        %v2178 = vrot.slane %v2177, 2
        %v2179 = vmax.f32 %v2177, %v2178
        %v2180 = vrot.slane %v2179, 1
        %v2181 = vmax.f32 %v2179, %v2180
        %v2182 = vmax.f32 %v2161, %v2162
        %v2183 = vrot.slane %v2182, 4
        %v2184 = vmax.f32 %v2182, %v2183
        %v2185 = vrot.slane %v2184, 2
        %v2186 = vmax.f32 %v2184, %v2185
        %v2187 = vrot.slane %v2186, 1
        %v2188 = vmax.f32 %v2186, %v2187
        %v2189 = vmax.f32 %v2163, %v2164
        %v2190 = vrot.slane %v2189, 4
        %v2191 = vmax.f32 %v2189, %v2190
        %v2192 = vrot.slane %v2191, 2
        %v2193 = vmax.f32 %v2191, %v2192
        %v2194 = vrot.slane %v2193, 1
        %v2195 = vmax.f32 %v2193, %v2194
        %v2196 = vmax.f32 %v2165, %v2166
        %v2197 = vrot.slane %v2196, 4
        %v2198 = vmax.f32 %v2196, %v2197
        %v2199 = vrot.slane %v2198, 2
        %v2200 = vmax.f32 %v2198, %v2199
        %v2201 = vrot.slane %v2200, 1
        %v2202 = vmax.f32 %v2200, %v2201
        %v2203 = vmax.f32 %v2167, %v2168
        %v2204 = vrot.slane %v2203, 4
        %v2205 = vmax.f32 %v2203, %v2204
        %v2206 = vrot.slane %v2205, 2
        %v2207 = vmax.f32 %v2205, %v2206
        %v2208 = vrot.slane %v2207, 1
        %v2209 = vmax.f32 %v2207, %v2208
        %v2210 = vmax.f32 %v2169, %v2170
        %v2211 = vrot.slane %v2210, 4
        %v2212 = vmax.f32 %v2210, %v2211
        %v2213 = vrot.slane %v2212, 2
        %v2214 = vmax.f32 %v2212, %v2213
        %v2215 = vrot.slane %v2214, 1
        %v2216 = vmax.f32 %v2214, %v2215
        %v2217 = vmax.f32 %v2171, %v2172
        %v2218 = vrot.slane %v2217, 4
        %v2219 = vmax.f32 %v2217, %v2218
        %v2220 = vrot.slane %v2219, 2
        %v2221 = vmax.f32 %v2219, %v2220
        %v2222 = vrot.slane %v2221, 1
        %v2223 = vmax.f32 %v2221, %v2222
        %v2224 = vmax.f32 %v2173, %v2174
        %v2225 = vrot.slane %v2224, 4
        %v2226 = vmax.f32 %v2224, %v2225
        %v2227 = vrot.slane %v2226, 2
        %v2228 = vmax.f32 %v2226, %v2227
        %v2229 = vrot.slane %v2228, 1
        %v2230 = vmax.f32 %v2228, %v2229
        %v2231 = vpack.c.bf16 %v2181, %v2181
        %v2232 = vpack.c.bf16 %v2188, %v2188
        %v2233 = vpack.c.bf16 %v2195, %v2195
        %v2234 = vpack.c.bf16 %v2202, %v2202
        %v2235 = vpack.c.bf16 %v2209, %v2209
        %v2236 = vpack.c.bf16 %v2216, %v2216
        %v2237 = vpack.c.bf16 %v2223, %v2223
        %v2238 = vpack.c.bf16 %v2230, %v2230
        %v2239 = vld [vmem:[#allocation5] sm:$0xf]
        %v2240 = vld [vmem:[#allocation5 + $0x4] sm:$0xf]
        %v2241 = vld [vmem:[#allocation5 + $0x8] sm:$0xf]
        %v2242 = vld [vmem:[#allocation5 + $0xc] sm:$0xf]
        %v2243 = vld [vmem:[#allocation5 + $0x10] sm:$0xf]
        %v2244 = vld [vmem:[#allocation5 + $0x14] sm:$0xf]
        %v2245 = vld [vmem:[#allocation5 + $0x18] sm:$0xf]
        %v2246 = vld [vmem:[#allocation5 + $0x1c] sm:$0xf]
        %v2247 = vld [vmem:[#allocation5 + $0x20] sm:$0xf]
        %v2248 = vld [vmem:[#allocation5 + $0x24] sm:$0xf]
        %v2249 = vld [vmem:[#allocation5 + $0x28] sm:$0xf]
        %v2250 = vld [vmem:[#allocation5 + $0x2c] sm:$0xf]
        %v2251 = vld [vmem:[#allocation5 + $0x30] sm:$0xf]
        %v2252 = vld [vmem:[#allocation5 + $0x34] sm:$0xf]
        %v2253 = vld [vmem:[#allocation5 + $0x38] sm:$0xf]
        %v2254 = vld [vmem:[#allocation5 + $0x3c] sm:$0xf]
        %v2255 = vld [vmem:[%s5] sm:$0x1]
        %v2257 = vlaneseq
        %v2258 = vshrl.u32 %v2257, 7
        %v2259 = vsub.s32 0, %v2258
        %v2260 = vrot.slane %v2255, %v2259
        %v2270 = vunpack.c.l.b16 %v2231
        %v2271 = vunpack.c.l.b16 %v2232
        %v2272 = vunpack.c.l.b16 %v2233
        %v2273 = vunpack.c.l.b16 %v2234
        %v2274 = vunpack.c.l.b16 %v2235
        %v2275 = vunpack.c.l.b16 %v2236
        %v2276 = vunpack.c.l.b16 %v2237
        %v2277 = vunpack.c.l.b16 %v2238
        %vm2278 = vcmask 1041409
        %v2279 = vsel %vm2278, %v2271, %v2270
        %vm2280 = vcmask 1042434
        %v2281 = vsel %vm2280, %v2272, %v2279
        %vm2282 = vcmask 1043459
        %v2283 = vsel %vm2282, %v2273, %v2281
        %vm2284 = vcmask 1044484
        %v2285 = vsel %vm2284, %v2274, %v2283
        %vm2286 = vcmask 1045509
        %v2287 = vsel %vm2286, %v2275, %v2285
        %vm2288 = vcmask 1046534
        %v2289 = vsel %vm2288, %v2276, %v2287
        %vm2290 = vcmask 1047559
        %v2291 = vsel %vm2290, %v2277, %v2289
        %v2292 = vpack.c.b16 %v2291, %v2291
        %v2310 = vunpack.c.l.b16 %v2239
        %v2311 = vunpack.c.l.b16 %v2240
        %v2312 = vunpack.c.l.b16 %v2241
        %v2313 = vunpack.c.l.b16 %v2242
        %v2314 = vunpack.c.l.b16 %v2243
        %v2315 = vunpack.c.l.b16 %v2244
        %v2316 = vunpack.c.l.b16 %v2245
        %v2317 = vunpack.c.l.b16 %v2246
        %v2318 = vunpack.c.l.b16 %v2247
        %v2319 = vunpack.c.l.b16 %v2248
        %v2320 = vunpack.c.l.b16 %v2249
        %v2321 = vunpack.c.l.b16 %v2250
        %v2322 = vunpack.c.l.b16 %v2251
        %v2323 = vunpack.c.l.b16 %v2252
        %v2324 = vunpack.c.l.b16 %v2253
        %v2325 = vunpack.c.l.b16 %v2254
        %v2326 = vpack.c.b16 %v2311, %v2310
        %v2327 = vpack.c.b16 %v2313, %v2312
        %v2328 = vpack.c.b16 %v2315, %v2314
        %v2329 = vpack.c.b16 %v2317, %v2316
        %v2330 = vpack.c.b16 %v2319, %v2318
        %v2331 = vpack.c.b16 %v2321, %v2320
        %v2332 = vpack.c.b16 %v2323, %v2322
        %v2333 = vpack.c.b16 %v2325, %v2324
        %2342 = vmatprep.subr.bf16.mxu0 0
        %2343 = vmatpush1.bf16.msra.mxu0 %v2333
        %2344 = vmatprep.subr.bf16.mxu0 0
        %2345 = vmatpush1.bf16.msra.mxu0 %v2332
        %2346 = vmatprep.subr.bf16.mxu0 0
        %2347 = vmatpush1.bf16.msra.mxu0 %v2331
        %2348 = vmatprep.subr.bf16.mxu0 0
        %2349 = vmatpush1.bf16.msra.mxu0 %v2330
        %2350 = vmatprep.subr.bf16.mxu0 0
        %2351 = vmatpush1.bf16.msra.mxu0 %v2329
        %2352 = vmatprep.subr.bf16.mxu0 0
        %2353 = vmatpush1.bf16.msra.mxu0 %v2328
        %2354 = vmatprep.subr.bf16.mxu0 0
        %2355 = vmatpush1.bf16.msra.mxu0 %v2327
        %2356 = vmatprep.subr.bf16.mxu0 0
        %2357 = vmatpush1.bf16.msra.mxu0 %v2326
        %2358 = vmatprep.subr.bf16.mxu0 0
        %2359 = vmatpush2.bf16.msra.mxu0 0
        %2360 = vmatprep.subr.bf16.mxu0 0
        %2361 = vmatpush2.bf16.msra.mxu0 0
        %2362 = vmatprep.subr.bf16.mxu0 0
        %2363 = vmatpush2.bf16.msra.mxu0 0
        %2364 = vmatprep.subr.bf16.mxu0 0
        %2365 = vmatpush2.bf16.msra.mxu0 0
        %2366 = vmatprep.subr.bf16.mxu0 0
        %2367 = vmatpush2.bf16.msra.mxu0 0
        %2368 = vmatprep.subr.bf16.mxu0 0
        %2369 = vmatpush2.bf16.msra.mxu0 0
        %2370 = vmatprep.subr.bf16.mxu0 0
        %2371 = vmatpush2.bf16.msra.mxu0 0
        %2372 = vmatprep.subr.bf16.mxu0 0
        %2373 = vmatpush2.bf16.msra.mxu0 0
        %2374 = vmatprep.mubr.bf16.mxu0 0
        %2375 = vmatmul.mubr.bf16.gmra.mxu0 %v2292
        %v2376 = vpop.f32.mrf.mxu0
        %v2377 = vadd.f32 %v2260, %v2376
        %v2378 = vpop.f32.mrf.mxu0
        %v2379 = vpop.f32.mrf.mxu0
        %v2380 = vpop.f32.mrf.mxu0
        %2381 = vdwg.mxu0
        %2382 = vst [vmem:[%s274] sm:$0xff] %v2377
        %s2383 = sand.u32 %s161, 1
        %s2384 = scalar_lea.sflag [#allocation4], %s2383
        %s2385 = sand.u32 %s161, 1
        %s2386 = smul.addr %s2385, 8
        %s2387 = scalar_lea.vmem [#allocation7], %s2386
        // Predicated region
        $region53: #{tpu_custom_call.1} parent=43 // pred_check
          %p2388 = pneg %p171
        $region54: #{tpu_custom_call.1} parent=43 // pred_check_branch
          %2390 = sbr.rel (%p2388) target = $region56
        $region55: #{tpu_custom_call.1} parent=43 // pred_region
          %s2392 = ssub.s32 128, 128
          %2393 = vsyncadd %s2384, %s2392
          %s2394 = smul.addr %s22, 128
          %s2395 = scalar_lea.hbm %s6, %s2394
          %s2397 = sshll.u32 %s2387, 4
          %s2398 = int_to_ptr.vmem [resolvable:$true] %s2397
          %2400 = dma.vmem_to_hbm [thread:$0]  %s2398, 128, %s2395, %s2384
        $region56: #{tpu_custom_call.1} parent=43 // pred_fallthru
          _
      $region44: #{tpu_custom_call.1} parent=5 // pred_fallthru
        _
      %p2401 = scmp.le.s32.totalorder 2, %s17
      // Predicated region
      $region57: #{tpu_custom_call.1} parent=5 // pred_check
        %p2402 = pneg %p2401
      $region58: #{tpu_custom_call.1} parent=5 // pred_check_branch
        %2404 = sbr.rel (%p2402) target = $region60
      $region59: #{tpu_custom_call.1} parent=5 // pred_region
        %s2405 = ssub.s32 %s17, 2
        // Predicated region
        $region61: #{tpu_custom_call.1} parent=59 // pred_check
          %p2406 = pneg %p177
        $region62: #{tpu_custom_call.1} parent=59 // pred_check_branch
          %2408 = sbr.rel (%p2406) target = $region64
        $region63: #{tpu_custom_call.1} parent=59 // pred_region
          %s2409 = sand.u32 %s162, 1
          %s2410 = scalar_lea.sflag [#allocation4], %s2409
          %s2411 = sand.u32 %s162, 1
          %s2412 = smul.addr %s2411, 8
          %s2413 = scalar_lea.vmem [#allocation7], %s2412
          %2414 = dma.done %s2410, 128
        $region64: #{tpu_custom_call.1} parent=59 // pred_fallthru
          _
      $region60: #{tpu_custom_call.1} parent=5 // pred_fallthru
        _
    $region6: #{tpu_custom_call.1} parent=1 // loop_footer
      %s21 = sadd.s32 1, %s17
    $region7: #{tpu_custom_call.1} parent=1 // loop_footer_branch
      %16 = sbr.rel target = $region3
    $region8: #{tpu_custom_call.1} parent=1 // loop_exit
      _
    %2415 = vsyncpa [#allocation3], 1
    %s2416 = scalar_lea.sflag [#allocation3], 1
    %2417 = vsyncpa %s2416, 1
    %2418 = vsyncpa [#allocation6], 1
    %2419 = vsyncpa [#allocation4], 1
    %s2420 = scalar_lea.sflag [#allocation4], 1
    %2421 = vsyncpa %s2420, 1

</llo_original>
